<compile_context>
chip_gen: v5e
topology: v5e:2x2
jax: 0.10.0
libtpu: 0.0.40
codegen_flags: <defaults>
</compile_context>

<pallas_src>
import jax
import jax.numpy as jnp
import numpy as np
from jax.experimental import pallas as pl
from jax.experimental.pallas import tpu as pltpu

LEAKY_SLOPE = 0.01
BN_EPS = 1e-5


def _round_up(x, m):
    return ((x + m - 1) // m) * m


def _leaky_relu(x, slope=LEAKY_SLOPE):
    # maximum(x, slope*x) is a single VPU mul + max; valid because slope < 1.
    return jnp.maximum(x, slope * x)


# ----------------------------------------------------------------------------
# Kernel
# ----------------------------------------------------------------------------
def roi_head_kernel(x_ref, w1_ref, t1_ref, w2_ref, t2_ref, wh_ref, bh_ref,
                    out_ref):
    # Layer 1 (both branches fused, pool + BN scale folded into w1).
    x = x_ref[...].astype(jnp.bfloat16)
    h = jnp.dot(x, w1_ref[...], preferred_element_type=jnp.float32)
    h = _leaky_relu(h + t1_ref[...])

    # Layer 2 (block-diagonal over the two branches, BN scale folded).
    h = jnp.dot(h.astype(jnp.bfloat16), w2_ref[...],
                preferred_element_type=jnp.float32)
    h = _leaky_relu(h + t2_ref[...])

    # Fused heads: [h1 | h2] @ [[wc | wb | 0]; [0 | 0 | wi]] + [bc | bb | bi],
    # zero-padded to a lane-dense output width (unmasked vst).
    out_ref[...] = (jnp.dot(h.astype(jnp.bfloat16), wh_ref[...],
                            preferred_element_type=jnp.float32)
                    + bh_ref[...])


# ----------------------------------------------------------------------------
# Parameter packing (one-time, plain JAX): fold pool + BN, merge branches/heads
# ----------------------------------------------------------------------------
def pack_params(p, C, H, W):
    """Turn 'raw' FPNROIHead params into the fused kernel params."""
    hid = p["w1a"].shape[1]
    Hp, Wp = H // 2, W // 2

    def expand_pool(w):
        # (C*Hp*Wp, hid) -> (C*H*W, hid); folds avg_pool2d(x, 2) (the 0.25).
        w4 = (w.reshape(C, Hp, 1, Wp, 1, hid) * 0.25)
        w4 = jnp.broadcast_to(w4, (C, Hp, 2, Wp, 2, hid))
        return w4.reshape(C * H * W, hid)

    # Layer 1: concat both branches, fold BN scale into columns.
    w1 = jnp.concatenate([expand_pool(p["w1a"]) * p["s1a"],
                          expand_pool(p["w2a"]) * p["s2a"]], axis=1)
    t1 = jnp.concatenate([p["t1a"], p["t2a"]], axis=1)

    # Layer 2: block-diagonal, fold BN scale into columns.
    z = jnp.zeros((hid, hid), jnp.float32)
    w2 = jnp.concatenate(
        [jnp.concatenate([p["w1b"], z], axis=1),
         jnp.concatenate([z, p["w2b"]], axis=1)], axis=0)
    s2 = jnp.concatenate([p["s1b"], p["s2b"]], axis=1)
    w2 = w2 * s2
    t2 = jnp.concatenate([p["t1b"], p["t2b"]], axis=1)

    # Fused heads with zero blocks so branch-1 feeds cls/bbx, branch-2 feeds iou.
    n_cls, n_bbx, n_iou = p["wc"].shape[1], p["wb"].shape[1], p["wi"].shape[1]
    n_out = n_cls + n_bbx + n_iou
    out_pad = _round_up(n_out, 128)
    wh = jnp.concatenate(
        [jnp.concatenate([p["wc"], p["wb"],
                          jnp.zeros((hid, n_iou), jnp.float32)], axis=1),
         jnp.concatenate([jnp.zeros((hid, n_cls), jnp.float32),
                          jnp.zeros((hid, n_bbx), jnp.float32),
                          p["wi"]], axis=1)], axis=0)
    bh = jnp.concatenate([p["bc"], p["bb"], p["bi"]], axis=1)
    wh = jnp.pad(wh, ((0, 0), (0, out_pad - n_out)))
    bh = jnp.pad(bh, ((0, 0), (0, out_pad - n_out)))

    return {
        "w1": w1.astype(jnp.bfloat16), "t1": t1,
        "w2": w2.astype(jnp.bfloat16), "t2": t2,
        "wh": wh.astype(jnp.bfloat16), "bh": bh,
        "splits": (n_cls, n_bbx, n_iou), "out_pad": out_pad,
    }


# ----------------------------------------------------------------------------
# Wrapper
# ----------------------------------------------------------------------------
def fpn_roi_head_forward(x, packed, tile_n=128):
    """Pallas implementation of FPNROIHead.forward (eval-mode ABN).

    x may be f32 or bf16 (bf16 input halves the kernel's HBM read)."""
    N, C, H, W = x.shape
    Din = C * H * W
    H2 = packed["w1"].shape[1]            # 2 * hidden
    OUTP = packed["out_pad"]
    n_cls, n_bbx, n_iou = packed["splits"]
    thing = n_bbx // 4

    # Pure layout op (contiguous NCHW -> flat); no transpose / copy.
    x_flat = x.reshape(N, Din)

    # Tile over ROIs; pad N up so the grid covers everything.
    tile_n = max(8, (min(tile_n, _round_up(N, 8)) // 8) * 8)
    Np = _round_up(N, tile_n)
    if Np != N:
        x_flat = jnp.pad(x_flat, ((0, Np - N), (0, 0)))
    grid = (Np // tile_n,)

    const = lambda i: (0, 0)
    in_specs = [
        pl.BlockSpec((tile_n, Din), lambda i: (i, 0)),   # x
        pl.BlockSpec((Din, H2), const),                  # fused layer-1 weight
        pl.BlockSpec((1, H2), const),                    # BN1/BN3 shift
        pl.BlockSpec((H2, H2), const),                   # block-diag layer-2
        pl.BlockSpec((1, H2), const),                    # BN2/BN4 shift
        pl.BlockSpec((H2, OUTP), const),                 # fused heads weight
        pl.BlockSpec((1, OUTP), const),                  # fused heads bias
    ]
    out_specs = pl.BlockSpec((tile_n, OUTP), lambda i: (i, 0))
    out_shape = jax.ShapeDtypeStruct((Np, OUTP), jnp.float32)

    x_bytes = x_flat.dtype.itemsize
    flops = 2 * Np * (Din * H2 + H2 * H2 + H2 * OUTP)
    bytes_accessed = (Np * Din * x_bytes
                      + (Din * H2 + H2 * H2 + H2 * OUTP) * 2
                      + (2 * H2 + OUTP) * 4
                      + Np * OUTP * 4)
    cost = pl.CostEstimate(flops=flops, transcendentals=0,
                           bytes_accessed=bytes_accessed)

    out = pl.pallas_call(
        roi_head_kernel,
        out_shape=out_shape,
        grid_spec=pltpu.PrefetchScalarGridSpec(
            num_scalar_prefetch=0,
            grid=grid,
            in_specs=in_specs,
            out_specs=out_specs,
        ),
        compiler_params=pltpu.CompilerParams(
            dimension_semantics=("parallel",)),
        cost_estimate=cost,
    )(x_flat, packed["w1"], packed["t1"], packed["w2"], packed["t2"],
      packed["wh"], packed["bh"])

    out = out[:N]
    cls = out[:, :n_cls]
    bbx = out[:, n_cls:n_cls + n_bbx].reshape(N, thing, 4)
    iou = out[:, n_cls + n_bbx:n_cls + n_bbx + n_iou]
    return cls, bbx, iou


# ----------------------------------------------------------------------------
# Deterministic "raw" parameter init mirroring FPNROIHead.reset_parameters
# ----------------------------------------------------------------------------
def make_params(key, in_channels, roi_size, hidden, thing):
    """Linear weights stored transposed as (in, out); eval-mode ABN
    (weight=1, bias=0, running_mean=0, running_var=1) folded into
    per-feature (scale, shift)."""
    D = (roi_size[0] * roi_size[1] * in_channels) // 4
    gain = float(np.sqrt(2.0 / (1.0 + LEAKY_SLOPE ** 2)))

    def xavier(k, fan_in, fan_out, g):
        std = g * np.sqrt(2.0 / (fan_in + fan_out))
        return (std * jax.random.normal(k, (fan_in, fan_out))).astype(jnp.float32)

    ks = jax.random.split(key, 8)
    bn_scale = jnp.full((1, hidden), 1.0 / np.sqrt(1.0 + BN_EPS), jnp.float32)
    bn_shift = jnp.zeros((1, hidden), jnp.float32)

    n_cls, n_bbx, n_iou = thing + 1, thing * 4, thing
    return {
        "w1a": xavier(ks[0], D, hidden, gain), "s1a": bn_scale, "t1a": bn_shift,
        "w1b": xavier(ks[1], hidden, hidden, gain), "s1b": bn_scale, "t1b": bn_shift,
        "w2a": xavier(ks[2], D, hidden, gain), "s2a": bn_scale, "t2a": bn_shift,
        "w2b": xavier(ks[3], hidden, hidden, gain), "s2b": bn_scale, "t2b": bn_shift,
        "wc": xavier(ks[4], hidden, n_cls, 0.01), "bc": jnp.zeros((1, n_cls), jnp.float32),
        "wb": xavier(ks[5], hidden, n_bbx, 0.001), "bb": jnp.zeros((1, n_bbx), jnp.float32),
        "wi": xavier(ks[6], hidden, n_iou, 0.001), "bi": jnp.zeros((1, n_iou), jnp.float32),
    }


def reference_forward(x, params):
    """Pure-JAX reference matching the PyTorch forward (eval-mode ABN)."""
    N, C, H, W = x.shape
    pooled = x.reshape(N, C, H // 2, 2, W // 2, 2).mean(axis=(3, 5))
    flat = pooled.reshape(N, -1)

    def lrelu(v):
        return jnp.where(v >= 0, v, LEAKY_SLOPE * v)

    def branch(f, wa, sa, ta, wb, sb, tb):
        h = jnp.dot(f, wa, precision=jax.lax.Precision.HIGHEST)
        h = lrelu(h * sa + ta)
        h = jnp.dot(h, wb, precision=jax.lax.Precision.HIGHEST)
        return lrelu(h * sb + tb)

    x1 = branch(flat, params["w1a"], params["s1a"], params["t1a"],
                params["w1b"], params["s1b"], params["t1b"])
    x2 = branch(flat, params["w2a"], params["s2a"], params["t2a"],
                params["w2b"], params["s2b"], params["t2b"])
    cls = jnp.dot(x1, params["wc"], precision=jax.lax.Precision.HIGHEST) + params["bc"]
    bbx = jnp.dot(x1, params["wb"], precision=jax.lax.Precision.HIGHEST) + params["bb"]
    iou = jnp.dot(x2, params["wi"], precision=jax.lax.Precision.HIGHEST) + params["bi"]
    return cls, bbx.reshape(N, -1, 4), iou


if __name__ == "__main__":
    # Small but MXU-representative shapes: 256 ROIs -> 2 parallel tiles of 128.
    N_ROIS = 256
    IN_CHANNELS = 4
    ROI_SIZE = (16, 16)
    HIDDEN = 128
    THING = 4  # classes['thing']

    key = jax.random.PRNGKey(0)
    k_x, k_p = jax.random.split(key)
    x = jax.random.normal(k_x, (N_ROIS, IN_CHANNELS, ROI_SIZE[0], ROI_SIZE[1]),
                          dtype=jnp.float32)
    raw = make_params(k_p, IN_CHANNELS, ROI_SIZE, HIDDEN, THING)
    packed = pack_params(raw, IN_CHANNELS, ROI_SIZE[0], ROI_SIZE[1])

    # Kernel consumes bf16 activations (halves the HBM read of x).
    cls, bbx, iou = fpn_roi_head_forward(x.astype(jnp.bfloat16), packed,
                                         tile_n=128)
    jax.block_until_ready((cls, bbx, iou))

    # Sanity check against the pure-JAX fp32 reference (unfused math).
    rcls, rbbx, riou = reference_forward(x, raw)
    np.testing.assert_allclose(np.asarray(cls), np.asarray(rcls), rtol=2e-2, atol=2e-2)
    np.testing.assert_allclose(np.asarray(bbx), np.asarray(rbbx), rtol=2e-2, atol=2e-2)
    np.testing.assert_allclose(np.asarray(iou), np.asarray(riou), rtol=2e-2, atol=2e-2)
    assert cls.shape == (N_ROIS, THING + 1)
    assert bbx.shape == (N_ROIS, THING, 4)
    assert iou.shape == (N_ROIS, THING)

    print("KERNEL_OK")
</pallas_src>

<mosaic_0001>
module attributes {stable_mosaic.version = 11 : i64} {
  func.func @roi_head_kernel(%arg0: i32, %arg1: memref<128x1024xbf16, #tpu.memory_space<vmem>>, %arg2: memref<1024x256xbf16, #tpu.memory_space<vmem>>, %arg3: memref<1x256xf32, #tpu.memory_space<vmem>>, %arg4: memref<256x256xbf16, #tpu.memory_space<vmem>>, %arg5: memref<1x256xf32, #tpu.memory_space<vmem>>, %arg6: memref<256x128xbf16, #tpu.memory_space<vmem>>, %arg7: memref<1x128xf32, #tpu.memory_space<vmem>>, %arg8: memref<128x128xf32, #tpu.memory_space<vmem>>) attributes {dimension_semantics = [#tpu.dimension_semantics<parallel>], iteration_bounds = array<i64: 2>, scalar_prefetch = 0 : i64, scratch_operands = 0 : i64, tpu.core_type = #tpu.core_type<tc>, window_params = [{transform_indices = @transform_0, window_bounds = array<i64: 128, 1024>}, {pipeline_mode = #tpu.pipeline_mode<synchronous>, transform_indices = @transform_1, window_bounds = array<i64: 1024, 256>}, {pipeline_mode = #tpu.pipeline_mode<synchronous>, transform_indices = @transform_2, window_bounds = array<i64: 1, 256>}, {pipeline_mode = #tpu.pipeline_mode<synchronous>, transform_indices = @transform_3, window_bounds = array<i64: 256, 256>}, {pipeline_mode = #tpu.pipeline_mode<synchronous>, transform_indices = @transform_4, window_bounds = array<i64: 1, 256>}, {pipeline_mode = #tpu.pipeline_mode<synchronous>, transform_indices = @transform_5, window_bounds = array<i64: 256, 128>}, {pipeline_mode = #tpu.pipeline_mode<synchronous>, transform_indices = @transform_6, window_bounds = array<i64: 1, 128>}, {transform_indices = @transform_7, window_bounds = array<i64: 128, 128>}]} {
    %c0 = arith.constant 0 : index
    %c0_0 = arith.constant 0 : index
    %0 = vector.load %arg1[%c0, %c0_0] : memref<128x1024xbf16, #tpu.memory_space<vmem>>, vector<128x1024xbf16>
    %c0_1 = arith.constant 0 : index
    %c0_2 = arith.constant 0 : index
    %1 = vector.load %arg2[%c0_1, %c0_2] : memref<1024x256xbf16, #tpu.memory_space<vmem>>, vector<1024x256xbf16>
    %cst = arith.constant dense<0.000000e+00> : vector<128x256xf32>
    %2 = tpu.matmul %0, %1, %cst {dimension_numbers = #tpu.dot_dimension_numbers<[1], [0], [0], [1], [0, 0, 1, 1], [], []>} : vector<128x1024xbf16>, vector<1024x256xbf16>, vector<128x256xf32> -> vector<128x256xf32>
    %c0_3 = arith.constant 0 : index
    %c0_4 = arith.constant 0 : index
    %3 = vector.load %arg3[%c0_3, %c0_4] : memref<1x256xf32, #tpu.memory_space<vmem>>, vector<1x256xf32>
    %4 = vector.broadcast %3 : vector<1x256xf32> to vector<128x256xf32>
    %5 = arith.addf %2, %4 : vector<128x256xf32>
    %cst_5 = arith.constant 0.00999999977 : f32
    %6 = vector.broadcast %cst_5 : f32 to vector<128x256xf32>
    %7 = arith.mulf %6, %5 : vector<128x256xf32>
    %8 = arith.maximumf %5, %7 : vector<128x256xf32>
    %9 = arith.truncf %8 : vector<128x256xf32> to vector<128x256xbf16>
    %c0_6 = arith.constant 0 : index
    %c0_7 = arith.constant 0 : index
    %10 = vector.load %arg4[%c0_6, %c0_7] : memref<256x256xbf16, #tpu.memory_space<vmem>>, vector<256x256xbf16>
    %cst_8 = arith.constant dense<0.000000e+00> : vector<128x256xf32>
    %11 = tpu.matmul %9, %10, %cst_8 {dimension_numbers = #tpu.dot_dimension_numbers<[1], [0], [0], [1], [0, 0, 1, 1], [], []>} : vector<128x256xbf16>, vector<256x256xbf16>, vector<128x256xf32> -> vector<128x256xf32>
    %c0_9 = arith.constant 0 : index
    %c0_10 = arith.constant 0 : index
    %12 = vector.load %arg5[%c0_9, %c0_10] : memref<1x256xf32, #tpu.memory_space<vmem>>, vector<1x256xf32>
    %13 = vector.broadcast %12 : vector<1x256xf32> to vector<128x256xf32>
    %14 = arith.addf %11, %13 : vector<128x256xf32>
    %cst_11 = arith.constant 0.00999999977 : f32
    %15 = vector.broadcast %cst_11 : f32 to vector<128x256xf32>
    %16 = arith.mulf %15, %14 : vector<128x256xf32>
    %17 = arith.maximumf %14, %16 : vector<128x256xf32>
    %18 = arith.truncf %17 : vector<128x256xf32> to vector<128x256xbf16>
    %c0_12 = arith.constant 0 : index
    %c0_13 = arith.constant 0 : index
    %19 = vector.load %arg6[%c0_12, %c0_13] : memref<256x128xbf16, #tpu.memory_space<vmem>>, vector<256x128xbf16>
    %cst_14 = arith.constant dense<0.000000e+00> : vector<128x128xf32>
    %20 = tpu.matmul %18, %19, %cst_14 {dimension_numbers = #tpu.dot_dimension_numbers<[1], [0], [0], [1], [0, 0, 1, 1], [], []>} : vector<128x256xbf16>, vector<256x128xbf16>, vector<128x128xf32> -> vector<128x128xf32>
    %c0_15 = arith.constant 0 : index
    %c0_16 = arith.constant 0 : index
    %21 = vector.load %arg7[%c0_15, %c0_16] : memref<1x128xf32, #tpu.memory_space<vmem>>, vector<1x128xf32>
    %22 = vector.broadcast %21 : vector<1x128xf32> to vector<128x128xf32>
    %23 = arith.addf %20, %22 : vector<128x128xf32>
    %c0_17 = arith.constant 0 : index
    %c0_18 = arith.constant 0 : index
    %24 = vector.load %arg8[%c0_17, %c0_18] : memref<128x128xf32, #tpu.memory_space<vmem>>, vector<128x128xf32>
    tpu.vector_store %arg8[%c0_17, %c0_18], %23 {strides = array<i32>} : memref<128x128xf32, #tpu.memory_space<vmem>>, vector<128x128xf32>,
    return
  }
  func.func @transform_0(%arg0: i32) -> (i32, i32) {
    %c0_i32 = arith.constant 0 : i32
    %c0_i32_0 = arith.constant 0 : i32
    return %arg0, %c0_i32 : i32, i32
  }
  func.func @transform_1(%arg0: i32) -> (i32, i32) {
    %c0_i32 = arith.constant 0 : i32
    %c0_i32_0 = arith.constant 0 : i32
    %c0_i32_1 = arith.constant 0 : i32
    return %c0_i32, %c0_i32_0 : i32, i32
  }
  func.func @transform_2(%arg0: i32) -> (i32, i32) {
    %c0_i32 = arith.constant 0 : i32
    %c0_i32_0 = arith.constant 0 : i32
    %c0_i32_1 = arith.constant 0 : i32
    return %c0_i32, %c0_i32_0 : i32, i32
  }
  func.func @transform_3(%arg0: i32) -> (i32, i32) {
    %c0_i32 = arith.constant 0 : i32
    %c0_i32_0 = arith.constant 0 : i32
    %c0_i32_1 = arith.constant 0 : i32
    return %c0_i32, %c0_i32_0 : i32, i32
  }
  func.func @transform_4(%arg0: i32) -> (i32, i32) {
    %c0_i32 = arith.constant 0 : i32
    %c0_i32_0 = arith.constant 0 : i32
    %c0_i32_1 = arith.constant 0 : i32
    return %c0_i32, %c0_i32_0 : i32, i32
  }
  func.func @transform_5(%arg0: i32) -> (i32, i32) {
    %c0_i32 = arith.constant 0 : i32
    %c0_i32_0 = arith.constant 0 : i32
    %c0_i32_1 = arith.constant 0 : i32
    return %c0_i32, %c0_i32_0 : i32, i32
  }
  func.func @transform_6(%arg0: i32) -> (i32, i32) {
    %c0_i32 = arith.constant 0 : i32
    %c0_i32_0 = arith.constant 0 : i32
    %c0_i32_1 = arith.constant 0 : i32
    return %c0_i32, %c0_i32_0 : i32, i32
  }
  func.func @transform_7(%arg0: i32) -> (i32, i32) {
    %c0_i32 = arith.constant 0 : i32
    %c0_i32_0 = arith.constant 0 : i32
    return %arg0, %c0_i32 : i32, i32
  }
}

</mosaic_0001>

<llo_original>
// kernel: tpu_custom_call.1
$region0: #{tpu_custom_call.1}
  #allocation0 [shape = 'u32[]', space=smem, size = 0x4, offset = 0x4, fixed_abs, tag = 'smem constant byte address 0x4 - core index']
  #allocation1 [shape = 'u32[72,128]{1,0:T(1,128)}', space=vmem, size = 0x9000, scoped, tag = 'internal scratch']
  %s0 = inlined_call_operand.hbm [shape: bf16[256,1024], index: 0, kind: input, shape index: {}]
  %s1 = inlined_call_operand.hbm [shape: bf16[1024,256], index: 1, kind: input, shape index: {}]
  %s2 = inlined_call_operand.hbm [shape: f32[1,256], index: 2, kind: input, shape index: {}]
  %s3 = inlined_call_operand.hbm [shape: bf16[256,256], index: 3, kind: input, shape index: {}]
  %s4 = inlined_call_operand.vmem [shape: f32[1,256], index: 4, kind: input, shape index: {}]
  %s5 = inlined_call_operand.hbm [shape: bf16[256,128], index: 5, kind: input, shape index: {}]
  %s6 = inlined_call_operand.vmem [shape: f32[1,128], index: 6, kind: input, shape index: {}]
  %s7 = inlined_call_operand.hbm [shape: f32[256,128], index: 7, kind: output, shape index: {}]
  %s8 = sld [smem:[#allocation0]]
  $region81: #{tpu_custom_call.1} parent=0
    _
  %s10 = ssub.s32 1, %s8
  %s11 = scalar_select 0, %s10, %s8
  $region1: #{tpu_custom_call.1} parent=0
    #allocation2 [shape = 'u8[524288]{0}', space=vmem, size = 0x80000, scoped, tag = 'input window, operand 0']
    #allocation3 [shape = 's32[2]{0}', space=sflag, size = 0x8, scoped, tag = 'scoped memory for tpu_custom_call.1']
    #allocation4 [shape = 's32[2]{0}', space=sflag, size = 0x8, scoped, tag = 'scoped memory for tpu_custom_call.1']
    #allocation5 [shape = 'u8[524288]{0}', space=vmem, size = 0x80000, scoped, tag = 'input window, operand 1, single buffered']
    #allocation6 [shape = 's32[1]{0}', space=sflag, size = 0x4, scoped, tag = 'scoped memory for tpu_custom_call.1']
    #allocation7 [shape = 'u8[1024]{0}', space=vmem, size = 0x400, scoped, tag = 'input window, operand 2, single buffered']
    #allocation8 [shape = 'u8[131072]{0}', space=vmem, size = 0x20000, scoped, tag = 'input window, operand 3, single buffered']
    #allocation9 [shape = 's32[1]{0}', space=sflag, size = 0x4, scoped, tag = 'scoped memory for tpu_custom_call.1']
    #allocation10 [shape = 'u8[65536]{0}', space=vmem, size = 0x10000, scoped, tag = 'input window, operand 5, single buffered']
    #allocation11 [shape = 'u8[131072]{0}', space=vmem, size = 0x20000, scoped, tag = 'output window, operand 0']
    %12 = vsyncpa [#allocation3], 0
    %s13 = scalar_lea.sflag [#allocation3], 1
    %14 = vsyncpa %s13, 0
    %15 = vsyncpa [#allocation6], 0
    %16 = vsyncpa [#allocation9], 0
    %17 = vsyncpa [#allocation4], 0
    %s18 = scalar_lea.sflag [#allocation4], 1
    %19 = vsyncpa %s18, 0
    loop: start=0, step=1, limit=4
    $region2: #{tpu_custom_call.1} parent=1 // loop_pre_header
      _
    $region3: #{tpu_custom_call.1} parent=1 // loop_header
      %s21 = sphi 0, %s25
      %p22 = scmp.ge.s32.totalorder %s21, 4
      %s31 = sphi 0, %s33
      %s34 = sphi 0, %s31
      %s35 = sphi 0, %s34
      %s51 = sphi 0, %s35
      %s55 = sphi 0, %s55
      %s57 = sphi 0, %s55
      %s58 = sphi 0, %s57
      %s72 = sphi 0, %s58
      %s76 = sphi 0, %s76
      %s78 = sphi 0, %s76
      %s79 = sphi 0, %s78
      %s93 = sphi 0, %s79
      %s97 = sphi 0, %s97
      %s99 = sphi 0, %s97
      %s100 = sphi 0, %s99
      %s114 = sphi 0, %s100
      %s118 = sphi 0, %s118
      %s120 = sphi 0, %s118
      %s121 = sphi 0, %s120
      %s135 = sphi 0, %s121
      %s139 = sphi 0, %s139
      %s141 = sphi 0, %s139
      %s142 = sphi 0, %s141
      %s156 = sphi 0, %s142
      %s160 = sphi 0, %s160
      %s162 = sphi 0, %s160
      %s163 = sphi 0, %s162
      %s177 = sphi 0, %s163
      %s183 = sphi 0, %s185
      %s186 = sphi 0, %s183
      %s187 = sphi 0, %s186
      %s203 = sphi 0, %s187
    $region4: #{tpu_custom_call.1} parent=1 // loop_header_branch
      %24 = sbr.rel (%p22) target = $region8
    $region5: #{tpu_custom_call.1} parent=1 // loop_body
      %s26 = ssub.s32 %s21, 1
      %s27 = ssub.s32 %s21, 2
      %s28 = sadd.s32 %s21, 1
      %s29 = ssub.s32 %s21, %s28
      %p30 = scmp.eq.s32.totalorder %s29, 0
      %s32 = sadd.s32 %s31, 1
      %s33 = scalar_select %p30, %s31, %s32
      %p36 = pneg %p30
      %p37 = scmp.eq.s32.totalorder %s21, 1
      %p38 = por %p36, %p37
      %p39 = scmp.ne.s32.totalorder %s31, %s34
      %p40 = scmp.eq.s32.totalorder %s21, 0
      %p41 = por %p39, %p40
      %p42 = scmp.ne.s32.totalorder %s31, %s34
      %p43 = scmp.eq.s32.totalorder %s26, 1
      %p44 = por %p42, %p43
      %p45 = scmp.ne.s32.totalorder %s34, %s35
      %p46 = scmp.eq.s32.totalorder %s26, 0
      %p47 = por %p45, %p46
      %p48 = scmp.ne.s32.totalorder %s34, %s35
      %p49 = scmp.eq.s32.totalorder %s27, 1
      %p50 = por %p48, %p49
      %p52 = scmp.ne.s32.totalorder %s35, %s51
      %p53 = scmp.eq.s32.totalorder %s27, 0
      %p54 = por %p52, %p53
      %s56 = sadd.s32 %s55, 1
      %p59 = scmp.eq.s32.totalorder %s21, 1
      %p60 = scmp.ne.s32.totalorder %s55, %s57
      %p61 = scmp.eq.s32.totalorder %s21, 0
      %p62 = por %p60, %p61
      %p63 = scmp.ne.s32.totalorder %s55, %s57
      %p64 = scmp.eq.s32.totalorder %s26, 1
      %p65 = por %p63, %p64
      %p66 = scmp.ne.s32.totalorder %s57, %s58
      %p67 = scmp.eq.s32.totalorder %s26, 0
      %p68 = por %p66, %p67
      %p69 = scmp.ne.s32.totalorder %s57, %s58
      %p70 = scmp.eq.s32.totalorder %s27, 1
      %p71 = por %p69, %p70
      %p73 = scmp.ne.s32.totalorder %s58, %s72
      %p74 = scmp.eq.s32.totalorder %s27, 0
      %p75 = por %p73, %p74
      %s77 = sadd.s32 %s76, 1
      %p80 = scmp.eq.s32.totalorder %s21, 1
      %p81 = scmp.ne.s32.totalorder %s76, %s78
      %p82 = scmp.eq.s32.totalorder %s21, 0
      %p83 = por %p81, %p82
      %p84 = scmp.ne.s32.totalorder %s76, %s78
      %p85 = scmp.eq.s32.totalorder %s26, 1
      %p86 = por %p84, %p85
      %p87 = scmp.ne.s32.totalorder %s78, %s79
      %p88 = scmp.eq.s32.totalorder %s26, 0
      %p89 = por %p87, %p88
      %p90 = scmp.ne.s32.totalorder %s78, %s79
      %p91 = scmp.eq.s32.totalorder %s27, 1
      %p92 = por %p90, %p91
      %p94 = scmp.ne.s32.totalorder %s79, %s93
      %p95 = scmp.eq.s32.totalorder %s27, 0
      %p96 = por %p94, %p95
      %s98 = sadd.s32 %s97, 1
      %p101 = scmp.eq.s32.totalorder %s21, 1
      %p102 = scmp.ne.s32.totalorder %s97, %s99
      %p103 = scmp.eq.s32.totalorder %s21, 0
      %p104 = por %p102, %p103
      %p105 = scmp.ne.s32.totalorder %s97, %s99
      %p106 = scmp.eq.s32.totalorder %s26, 1
      %p107 = por %p105, %p106
      %p108 = scmp.ne.s32.totalorder %s99, %s100
      %p109 = scmp.eq.s32.totalorder %s26, 0
      %p110 = por %p108, %p109
      %p111 = scmp.ne.s32.totalorder %s99, %s100
      %p112 = scmp.eq.s32.totalorder %s27, 1
      %p113 = por %p111, %p112
      %p115 = scmp.ne.s32.totalorder %s100, %s114
      %p116 = scmp.eq.s32.totalorder %s27, 0
      %p117 = por %p115, %p116
      %s119 = sadd.s32 %s118, 1
      %p122 = scmp.eq.s32.totalorder %s21, 1
      %p123 = scmp.ne.s32.totalorder %s118, %s120
      %p124 = scmp.eq.s32.totalorder %s21, 0
      %p125 = por %p123, %p124
      %p126 = scmp.ne.s32.totalorder %s118, %s120
      %p127 = scmp.eq.s32.totalorder %s26, 1
      %p128 = por %p126, %p127
      %p129 = scmp.ne.s32.totalorder %s120, %s121
      %p130 = scmp.eq.s32.totalorder %s26, 0
      %p131 = por %p129, %p130
      %p132 = scmp.ne.s32.totalorder %s120, %s121
      %p133 = scmp.eq.s32.totalorder %s27, 1
      %p134 = por %p132, %p133
      %p136 = scmp.ne.s32.totalorder %s121, %s135
      %p137 = scmp.eq.s32.totalorder %s27, 0
      %p138 = por %p136, %p137
      %s140 = sadd.s32 %s139, 1
      %p143 = scmp.eq.s32.totalorder %s21, 1
      %p144 = scmp.ne.s32.totalorder %s139, %s141
      %p145 = scmp.eq.s32.totalorder %s21, 0
      %p146 = por %p144, %p145
      %p147 = scmp.ne.s32.totalorder %s139, %s141
      %p148 = scmp.eq.s32.totalorder %s26, 1
      %p149 = por %p147, %p148
      %p150 = scmp.ne.s32.totalorder %s141, %s142
      %p151 = scmp.eq.s32.totalorder %s26, 0
      %p152 = por %p150, %p151
      %p153 = scmp.ne.s32.totalorder %s141, %s142
      %p154 = scmp.eq.s32.totalorder %s27, 1
      %p155 = por %p153, %p154
      %p157 = scmp.ne.s32.totalorder %s142, %s156
      %p158 = scmp.eq.s32.totalorder %s27, 0
      %p159 = por %p157, %p158
      %s161 = sadd.s32 %s160, 1
      %p164 = scmp.eq.s32.totalorder %s21, 1
      %p165 = scmp.ne.s32.totalorder %s160, %s162
      %p166 = scmp.eq.s32.totalorder %s21, 0
      %p167 = por %p165, %p166
      %p168 = scmp.ne.s32.totalorder %s160, %s162
      %p169 = scmp.eq.s32.totalorder %s26, 1
      %p170 = por %p168, %p169
      %p171 = scmp.ne.s32.totalorder %s162, %s163
      %p172 = scmp.eq.s32.totalorder %s26, 0
      %p173 = por %p171, %p172
      %p174 = scmp.ne.s32.totalorder %s162, %s163
      %p175 = scmp.eq.s32.totalorder %s27, 1
      %p176 = por %p174, %p175
      %p178 = scmp.ne.s32.totalorder %s163, %s177
      %p179 = scmp.eq.s32.totalorder %s27, 0
      %p180 = por %p178, %p179
      %s181 = ssub.s32 %s21, %s28
      %p182 = scmp.eq.s32.totalorder %s181, 0
      %s184 = sadd.s32 %s183, 1
      %s185 = scalar_select %p182, %s183, %s184
      %p188 = pneg %p182
      %p189 = scmp.eq.s32.totalorder %s21, 1
      %p190 = por %p188, %p189
      %p191 = scmp.ne.s32.totalorder %s183, %s186
      %p192 = scmp.eq.s32.totalorder %s21, 0
      %p193 = por %p191, %p192
      %p194 = scmp.ne.s32.totalorder %s183, %s186
      %p195 = scmp.eq.s32.totalorder %s26, 1
      %p196 = por %p194, %p195
      %p197 = scmp.ne.s32.totalorder %s186, %s187
      %p198 = scmp.eq.s32.totalorder %s26, 0
      %p199 = por %p197, %p198
      %p200 = scmp.ne.s32.totalorder %s186, %s187
      %p201 = scmp.eq.s32.totalorder %s27, 1
      %p202 = por %p200, %p201
      %p204 = scmp.ne.s32.totalorder %s187, %s203
      %p205 = scmp.eq.s32.totalorder %s27, 0
      %p206 = por %p204, %p205
      %p207 = scmp.le.s32.totalorder 1, %s21
      %p208 = scmp.lt.s32.totalorder %s21, 3
      %p209 = pnand %p207, %p208
      %p210 = pneg %p209
      // Predicated region
      $region9: #{tpu_custom_call.1} parent=5 // pred_check
        _
      $region10: #{tpu_custom_call.1} parent=5 // pred_check_branch
        %212 = sbr.rel (%p209) target = $region12
      $region11: #{tpu_custom_call.1} parent=5 // pred_region
        %s213 = ssub.s32 %s21, 1
        // Predicated region
        $region13: #{tpu_custom_call.1} parent=11 // pred_check
          %p214 = pneg %p68
        $region14: #{tpu_custom_call.1} parent=11 // pred_check_branch
          %216 = sbr.rel (%p214) target = $region16
        $region15: #{tpu_custom_call.1} parent=11 // pred_region
          %218 = vsyncadd [#allocation6], 0
          %s219 = sshll.u32 %s1, 4
          %s220 = int_to_ptr.hbm [resolvable:$true] %s219
          %s221 = sshll.u32 [#allocation5], 4
          %s222 = int_to_ptr.vmem [resolvable:$true] %s221
          %227 = dma.hbm_to_vmem [thread:$0]  %s220, 16384, %s222, [#allocation6], 128, 128, 8
        $region16: #{tpu_custom_call.1} parent=11 // pred_fallthru
          _
        // Predicated region
        $region17: #{tpu_custom_call.1} parent=11 // pred_check
          %p228 = pneg %p89
        $region18: #{tpu_custom_call.1} parent=11 // pred_check_branch
          %230 = sbr.rel (%p228) target = $region20
        $region19: #{tpu_custom_call.1} parent=11 // pred_region
          %232 = vsyncadd [#allocation6], 0
          %s234 = sshll.u32 %s2, 4
          %s235 = int_to_ptr.hbm [resolvable:$true] %s234
          %s236 = sshll.u32 [#allocation7], 4
          %s237 = int_to_ptr.vmem [resolvable:$true] %s236
          %239 = dma.hbm_to_vmem [thread:$0]  %s235, 32, %s237, [#allocation6]
        $region20: #{tpu_custom_call.1} parent=11 // pred_fallthru
          _
        // Predicated region
        $region21: #{tpu_custom_call.1} parent=11 // pred_check
          %p240 = pneg %p110
        $region22: #{tpu_custom_call.1} parent=11 // pred_check_branch
          %242 = sbr.rel (%p240) target = $region24
        $region23: #{tpu_custom_call.1} parent=11 // pred_region
          %244 = vsyncadd [#allocation9], 0
          %s245 = sshll.u32 %s3, 4
          %s246 = int_to_ptr.hbm [resolvable:$true] %s245
          %s247 = sshll.u32 [#allocation8], 4
          %s248 = int_to_ptr.vmem [resolvable:$true] %s247
          %253 = dma.hbm_to_vmem [thread:$0]  %s246, 4096, %s248, [#allocation9], 128, 128, 8
        $region24: #{tpu_custom_call.1} parent=11 // pred_fallthru
          _
        // Predicated region
        $region25: #{tpu_custom_call.1} parent=11 // pred_check
          %p254 = pneg %p131
        $region26: #{tpu_custom_call.1} parent=11 // pred_check_branch
          %256 = sbr.rel (%p254) target = $region28
        $region27: #{tpu_custom_call.1} parent=11 // pred_region
          _
        $region28: #{tpu_custom_call.1} parent=11 // pred_fallthru
          _
        // Predicated region
        $region29: #{tpu_custom_call.1} parent=11 // pred_check
          %p257 = pneg %p152
        $region30: #{tpu_custom_call.1} parent=11 // pred_check_branch
          %259 = sbr.rel (%p257) target = $region32
        $region31: #{tpu_custom_call.1} parent=11 // pred_region
          %261 = vsyncadd [#allocation9], 0
          %s262 = sshll.u32 %s5, 4
          %s263 = int_to_ptr.hbm [resolvable:$true] %s262
          %s264 = sshll.u32 [#allocation10], 4
          %s265 = int_to_ptr.vmem [resolvable:$true] %s264
          %270 = dma.hbm_to_vmem [thread:$0]  %s263, 2048, %s265, [#allocation9], 64, 64, 4
        $region32: #{tpu_custom_call.1} parent=11 // pred_fallthru
          _
        // Predicated region
        $region33: #{tpu_custom_call.1} parent=11 // pred_check
          %p271 = pneg %p173
        $region34: #{tpu_custom_call.1} parent=11 // pred_check_branch
          %273 = sbr.rel (%p271) target = $region36
        $region35: #{tpu_custom_call.1} parent=11 // pred_region
          _
        $region36: #{tpu_custom_call.1} parent=11 // pred_fallthru
          _
      $region12: #{tpu_custom_call.1} parent=5 // pred_fallthru
        _
      %p274 = scmp.lt.s32.totalorder %s21, 2
      // Predicated region
      $region37: #{tpu_custom_call.1} parent=5 // pred_check
        %p275 = pneg %p274
      $region38: #{tpu_custom_call.1} parent=5 // pred_check_branch
        %277 = sbr.rel (%p275) target = $region40
      $region39: #{tpu_custom_call.1} parent=5 // pred_region
        // Predicated region
        $region41: #{tpu_custom_call.1} parent=39 // pred_check
          %p278 = pneg %p41
        $region42: #{tpu_custom_call.1} parent=39 // pred_check_branch
          %280 = sbr.rel (%p278) target = $region44
        $region43: #{tpu_custom_call.1} parent=39 // pred_region
          %s281 = sand.u32 %s31, 1
          %s282 = scalar_lea.sflag [#allocation3], %s281
          %s283 = sand.u32 %s31, 1
          %s284 = smul.addr %s283, 512
          %s285 = scalar_lea.vmem [#allocation2], %s284
          %s286 = smul.u32 16, %s21
          %288 = vsyncadd %s282, 0
          %s289 = smul.addr %s286, 8
          %s290 = smul.addr %s289, 4
          %s291 = scalar_lea.hbm %s0, %s290
          %s292 = sshll.u32 %s291, 4
          %s293 = int_to_ptr.hbm [resolvable:$true] %s292
          %s294 = sshll.u32 %s285, 4
          %s295 = int_to_ptr.vmem [resolvable:$true] %s294
          %300 = dma.hbm_to_vmem [thread:$0]  %s293, 8192, %s295, %s282, 512, 512, 32
        $region44: #{tpu_custom_call.1} parent=39 // pred_fallthru
          _
      $region40: #{tpu_custom_call.1} parent=5 // pred_fallthru
        _
      %p301 = scmp.le.s32.totalorder 1, %s21
      %p302 = scmp.lt.s32.totalorder %s21, 3
      %p303 = pnand %p301, %p302
      %p304 = pneg %p303
      // Predicated region
      $region45: #{tpu_custom_call.1} parent=5 // pred_check
        _
      $region46: #{tpu_custom_call.1} parent=5 // pred_check_branch
        %306 = sbr.rel (%p303) target = $region48
      $region47: #{tpu_custom_call.1} parent=5 // pred_region
        %s307 = ssub.s32 %s21, 1
        %s308 = sand.u32 %s34, 1
        %s309 = scalar_lea.sflag [#allocation3], %s308
        %s310 = sand.u32 %s34, 1
        %s311 = smul.addr %s310, 512
        %s312 = scalar_lea.vmem [#allocation2], %s311
        // Predicated region
        $region49: #{tpu_custom_call.1} parent=47 // pred_check
          %p313 = pneg %p47
        $region50: #{tpu_custom_call.1} parent=47 // pred_check_branch
          %315 = sbr.rel (%p313) target = $region52
        $region51: #{tpu_custom_call.1} parent=47 // pred_region
          %317 = dma.done %s309, 8192
        $region52: #{tpu_custom_call.1} parent=47 // pred_fallthru
          _
        // Predicated region
        $region53: #{tpu_custom_call.1} parent=47 // pred_check
          %p318 = pneg %p68
        $region54: #{tpu_custom_call.1} parent=47 // pred_check_branch
          %320 = sbr.rel (%p318) target = $region56
        $region55: #{tpu_custom_call.1} parent=47 // pred_region
          %322 = dma.done [#allocation6], 16384
        $region56: #{tpu_custom_call.1} parent=47 // pred_fallthru
          _
        // Predicated region
        $region57: #{tpu_custom_call.1} parent=47 // pred_check
          %p323 = pneg %p89
        $region58: #{tpu_custom_call.1} parent=47 // pred_check_branch
          %325 = sbr.rel (%p323) target = $region60
        $region59: #{tpu_custom_call.1} parent=47 // pred_region
          %327 = dma.done [#allocation6], 32
        $region60: #{tpu_custom_call.1} parent=47 // pred_fallthru
          _
        // Predicated region
        $region61: #{tpu_custom_call.1} parent=47 // pred_check
          %p328 = pneg %p110
        $region62: #{tpu_custom_call.1} parent=47 // pred_check_branch
          %330 = sbr.rel (%p328) target = $region64
        $region63: #{tpu_custom_call.1} parent=47 // pred_region
          %332 = dma.done [#allocation9], 4096
        $region64: #{tpu_custom_call.1} parent=47 // pred_fallthru
          _
        // Predicated region
        $region65: #{tpu_custom_call.1} parent=47 // pred_check
          %p333 = pneg %p152
        $region66: #{tpu_custom_call.1} parent=47 // pred_check_branch
          %335 = sbr.rel (%p333) target = $region68
        $region67: #{tpu_custom_call.1} parent=47 // pred_region
          %337 = dma.done [#allocation9], 2048
        $region68: #{tpu_custom_call.1} parent=47 // pred_fallthru
          _
        %s338 = sand.u32 %s34, 1
        %s339 = scalar_lea.sflag [#allocation3], %s338
        %s340 = sand.u32 %s34, 1
        %s341 = smul.addr %s340, 512
        %s342 = scalar_lea.vmem [#allocation2], %s341
        %p343 = pneg %p47
        %p344 = pneg %p44
        %p345 = pneg %p68
        %p346 = pneg %p65
        %p347 = pneg %p89
        %p348 = pneg %p86
        %p349 = pneg %p110
        %p350 = pneg %p107
        %p351 = pneg %p131
        %p352 = pneg %p128
        %p353 = pneg %p152
        %p354 = pneg %p149
        %p355 = pneg %p173
        %p356 = pneg %p170
        %p357 = pneg %p199
        %p358 = pneg %p196
        %s359 = sand.u32 %s186, 1
        %s360 = scalar_lea.sflag [#allocation4], %s359
        %s361 = sand.u32 %s186, 1
        %s362 = smul.addr %s361, 128
        %s363 = scalar_lea.vmem [#allocation11], %s362
        %s364 = smul.u32 16, %s26
        %s365 = smul.u32 16, %s26
        %v366 = vld [vmem:[%s312] sm:$0xff]
        %v367 = vld [vmem:[%s312 + $0x8] sm:$0xff]
        %v368 = vld [vmem:[%s312 + $0x10] sm:$0xff]
        %v369 = vld [vmem:[%s312 + $0x18] sm:$0xff]
        %v370 = vld [vmem:[%s312 + $0x20] sm:$0xff]
        %v371 = vld [vmem:[%s312 + $0x28] sm:$0xff]
        %v372 = vld [vmem:[%s312 + $0x30] sm:$0xff]
        %v373 = vld [vmem:[%s312 + $0x38] sm:$0xff]
        %v374 = vld [vmem:[%s312 + $0x40] sm:$0xff]
        %v375 = vld [vmem:[%s312 + $0x48] sm:$0xff]
        %v376 = vld [vmem:[%s312 + $0x50] sm:$0xff]
        %v377 = vld [vmem:[%s312 + $0x58] sm:$0xff]
        %v378 = vld [vmem:[%s312 + $0x60] sm:$0xff]
        %v379 = vld [vmem:[%s312 + $0x68] sm:$0xff]
        %v380 = vld [vmem:[%s312 + $0x70] sm:$0xff]
        %v381 = vld [vmem:[%s312 + $0x78] sm:$0xff]
        %v382 = vld [vmem:[%s312 + $0x80] sm:$0xff]
        %v383 = vld [vmem:[%s312 + $0x88] sm:$0xff]
        %v384 = vld [vmem:[%s312 + $0x90] sm:$0xff]
        %v385 = vld [vmem:[%s312 + $0x98] sm:$0xff]
        %v386 = vld [vmem:[%s312 + $0xa0] sm:$0xff]
        %v387 = vld [vmem:[%s312 + $0xa8] sm:$0xff]
        %v388 = vld [vmem:[%s312 + $0xb0] sm:$0xff]
        %v389 = vld [vmem:[%s312 + $0xb8] sm:$0xff]
        %v390 = vld [vmem:[%s312 + $0xc0] sm:$0xff]
        %v391 = vld [vmem:[%s312 + $0xc8] sm:$0xff]
        %v392 = vld [vmem:[%s312 + $0xd0] sm:$0xff]
        %v393 = vld [vmem:[%s312 + $0xd8] sm:$0xff]
        %v394 = vld [vmem:[%s312 + $0xe0] sm:$0xff]
        %v395 = vld [vmem:[%s312 + $0xe8] sm:$0xff]
        %v396 = vld [vmem:[%s312 + $0xf0] sm:$0xff]
        %v397 = vld [vmem:[%s312 + $0xf8] sm:$0xff]
        %v398 = vld [vmem:[%s312 + $0x100] sm:$0xff]
        %v399 = vld [vmem:[%s312 + $0x108] sm:$0xff]
        %v400 = vld [vmem:[%s312 + $0x110] sm:$0xff]
        %v401 = vld [vmem:[%s312 + $0x118] sm:$0xff]
        %v402 = vld [vmem:[%s312 + $0x120] sm:$0xff]
        %v403 = vld [vmem:[%s312 + $0x128] sm:$0xff]
        %v404 = vld [vmem:[%s312 + $0x130] sm:$0xff]
        %v405 = vld [vmem:[%s312 + $0x138] sm:$0xff]
        %v406 = vld [vmem:[%s312 + $0x140] sm:$0xff]
        %v407 = vld [vmem:[%s312 + $0x148] sm:$0xff]
        %v408 = vld [vmem:[%s312 + $0x150] sm:$0xff]
        %v409 = vld [vmem:[%s312 + $0x158] sm:$0xff]
        %v410 = vld [vmem:[%s312 + $0x160] sm:$0xff]
        %v411 = vld [vmem:[%s312 + $0x168] sm:$0xff]
        %v412 = vld [vmem:[%s312 + $0x170] sm:$0xff]
        %v413 = vld [vmem:[%s312 + $0x178] sm:$0xff]
        %v414 = vld [vmem:[%s312 + $0x180] sm:$0xff]
        %v415 = vld [vmem:[%s312 + $0x188] sm:$0xff]
        %v416 = vld [vmem:[%s312 + $0x190] sm:$0xff]
        %v417 = vld [vmem:[%s312 + $0x198] sm:$0xff]
        %v418 = vld [vmem:[%s312 + $0x1a0] sm:$0xff]
        %v419 = vld [vmem:[%s312 + $0x1a8] sm:$0xff]
        %v420 = vld [vmem:[%s312 + $0x1b0] sm:$0xff]
        %v421 = vld [vmem:[%s312 + $0x1b8] sm:$0xff]
        %v422 = vld [vmem:[%s312 + $0x1c0] sm:$0xff]
        %v423 = vld [vmem:[%s312 + $0x1c8] sm:$0xff]
        %v424 = vld [vmem:[%s312 + $0x1d0] sm:$0xff]
        %v425 = vld [vmem:[%s312 + $0x1d8] sm:$0xff]
        %v426 = vld [vmem:[%s312 + $0x1e0] sm:$0xff]
        %v427 = vld [vmem:[%s312 + $0x1e8] sm:$0xff]
        %v428 = vld [vmem:[%s312 + $0x1f0] sm:$0xff]
        %v429 = vld [vmem:[%s312 + $0x1f8] sm:$0xff]
        %v430 = vld [vmem:[#allocation5] sm:$0xff]
        %v431 = vld [vmem:[#allocation5 + $0x8] sm:$0xff]
        %v432 = vld [vmem:[#allocation5 + $0x10] sm:$0xff]
        %v433 = vld [vmem:[#allocation5 + $0x18] sm:$0xff]
        %v434 = vld [vmem:[#allocation5 + $0x20] sm:$0xff]
        %v435 = vld [vmem:[#allocation5 + $0x28] sm:$0xff]
        %v436 = vld [vmem:[#allocation5 + $0x30] sm:$0xff]
        %v437 = vld [vmem:[#allocation5 + $0x38] sm:$0xff]
        %v438 = vld [vmem:[#allocation5 + $0x40] sm:$0xff]
        %v439 = vld [vmem:[#allocation5 + $0x48] sm:$0xff]
        %v440 = vld [vmem:[#allocation5 + $0x50] sm:$0xff]
        %v441 = vld [vmem:[#allocation5 + $0x58] sm:$0xff]
        %v442 = vld [vmem:[#allocation5 + $0x60] sm:$0xff]
        %v443 = vld [vmem:[#allocation5 + $0x68] sm:$0xff]
        %v444 = vld [vmem:[#allocation5 + $0x70] sm:$0xff]
        %v445 = vld [vmem:[#allocation5 + $0x78] sm:$0xff]
        %v446 = vld [vmem:[#allocation5 + $0x80] sm:$0xff]
        %v447 = vld [vmem:[#allocation5 + $0x88] sm:$0xff]
        %v448 = vld [vmem:[#allocation5 + $0x90] sm:$0xff]
        %v449 = vld [vmem:[#allocation5 + $0x98] sm:$0xff]
        %v450 = vld [vmem:[#allocation5 + $0xa0] sm:$0xff]
        %v451 = vld [vmem:[#allocation5 + $0xa8] sm:$0xff]
        %v452 = vld [vmem:[#allocation5 + $0xb0] sm:$0xff]
        %v453 = vld [vmem:[#allocation5 + $0xb8] sm:$0xff]
        %v454 = vld [vmem:[#allocation5 + $0xc0] sm:$0xff]
        %v455 = vld [vmem:[#allocation5 + $0xc8] sm:$0xff]
        %v456 = vld [vmem:[#allocation5 + $0xd0] sm:$0xff]
        %v457 = vld [vmem:[#allocation5 + $0xd8] sm:$0xff]
        %v458 = vld [vmem:[#allocation5 + $0xe0] sm:$0xff]
        %v459 = vld [vmem:[#allocation5 + $0xe8] sm:$0xff]
        %v460 = vld [vmem:[#allocation5 + $0xf0] sm:$0xff]
        %v461 = vld [vmem:[#allocation5 + $0xf8] sm:$0xff]
        %v462 = vld [vmem:[#allocation5 + $0x100] sm:$0xff]
        %v463 = vld [vmem:[#allocation5 + $0x108] sm:$0xff]
        %v464 = vld [vmem:[#allocation5 + $0x110] sm:$0xff]
        %v465 = vld [vmem:[#allocation5 + $0x118] sm:$0xff]
        %v466 = vld [vmem:[#allocation5 + $0x120] sm:$0xff]
        %v467 = vld [vmem:[#allocation5 + $0x128] sm:$0xff]
        %v468 = vld [vmem:[#allocation5 + $0x130] sm:$0xff]
        %v469 = vld [vmem:[#allocation5 + $0x138] sm:$0xff]
        %v470 = vld [vmem:[#allocation5 + $0x140] sm:$0xff]
        %v471 = vld [vmem:[#allocation5 + $0x148] sm:$0xff]
        %v472 = vld [vmem:[#allocation5 + $0x150] sm:$0xff]
        %v473 = vld [vmem:[#allocation5 + $0x158] sm:$0xff]
        %v474 = vld [vmem:[#allocation5 + $0x160] sm:$0xff]
        %v475 = vld [vmem:[#allocation5 + $0x168] sm:$0xff]
        %v476 = vld [vmem:[#allocation5 + $0x170] sm:$0xff]
        %v477 = vld [vmem:[#allocation5 + $0x178] sm:$0xff]
        %v478 = vld [vmem:[#allocation5 + $0x180] sm:$0xff]
        %v479 = vld [vmem:[#allocation5 + $0x188] sm:$0xff]
        %v480 = vld [vmem:[#allocation5 + $0x190] sm:$0xff]
        %v481 = vld [vmem:[#allocation5 + $0x198] sm:$0xff]
        %v482 = vld [vmem:[#allocation5 + $0x1a0] sm:$0xff]
        %v483 = vld [vmem:[#allocation5 + $0x1a8] sm:$0xff]
        %v484 = vld [vmem:[#allocation5 + $0x1b0] sm:$0xff]
        %v485 = vld [vmem:[#allocation5 + $0x1b8] sm:$0xff]
        %v486 = vld [vmem:[#allocation5 + $0x1c0] sm:$0xff]
        %v487 = vld [vmem:[#allocation5 + $0x1c8] sm:$0xff]
        %v488 = vld [vmem:[#allocation5 + $0x1d0] sm:$0xff]
        %v489 = vld [vmem:[#allocation5 + $0x1d8] sm:$0xff]
        %v490 = vld [vmem:[#allocation5 + $0x1e0] sm:$0xff]
        %v491 = vld [vmem:[#allocation5 + $0x1e8] sm:$0xff]
        %v492 = vld [vmem:[#allocation5 + $0x1f0] sm:$0xff]
        %v493 = vld [vmem:[#allocation5 + $0x1f8] sm:$0xff]
        %v494 = vld [vmem:[#allocation5 + $0x200] sm:$0xff]
        %v495 = vld [vmem:[#allocation5 + $0x208] sm:$0xff]
        %v496 = vld [vmem:[#allocation5 + $0x210] sm:$0xff]
        %v497 = vld [vmem:[#allocation5 + $0x218] sm:$0xff]
        %v498 = vld [vmem:[#allocation5 + $0x220] sm:$0xff]
        %v499 = vld [vmem:[#allocation5 + $0x228] sm:$0xff]
        %v500 = vld [vmem:[#allocation5 + $0x230] sm:$0xff]
        %v501 = vld [vmem:[#allocation5 + $0x238] sm:$0xff]
        %v502 = vld [vmem:[#allocation5 + $0x240] sm:$0xff]
        %v503 = vld [vmem:[#allocation5 + $0x248] sm:$0xff]
        %v504 = vld [vmem:[#allocation5 + $0x250] sm:$0xff]
        %v505 = vld [vmem:[#allocation5 + $0x258] sm:$0xff]
        %v506 = vld [vmem:[#allocation5 + $0x260] sm:$0xff]
        %v507 = vld [vmem:[#allocation5 + $0x268] sm:$0xff]
        %v508 = vld [vmem:[#allocation5 + $0x270] sm:$0xff]
        %v509 = vld [vmem:[#allocation5 + $0x278] sm:$0xff]
        %v510 = vld [vmem:[#allocation5 + $0x280] sm:$0xff]
        %v511 = vld [vmem:[#allocation5 + $0x288] sm:$0xff]
        %v512 = vld [vmem:[#allocation5 + $0x290] sm:$0xff]
        %v513 = vld [vmem:[#allocation5 + $0x298] sm:$0xff]
        %v514 = vld [vmem:[#allocation5 + $0x2a0] sm:$0xff]
        %v515 = vld [vmem:[#allocation5 + $0x2a8] sm:$0xff]
        %v516 = vld [vmem:[#allocation5 + $0x2b0] sm:$0xff]
        %v517 = vld [vmem:[#allocation5 + $0x2b8] sm:$0xff]
        %v518 = vld [vmem:[#allocation5 + $0x2c0] sm:$0xff]
        %v519 = vld [vmem:[#allocation5 + $0x2c8] sm:$0xff]
        %v520 = vld [vmem:[#allocation5 + $0x2d0] sm:$0xff]
        %v521 = vld [vmem:[#allocation5 + $0x2d8] sm:$0xff]
        %v522 = vld [vmem:[#allocation5 + $0x2e0] sm:$0xff]
        %v523 = vld [vmem:[#allocation5 + $0x2e8] sm:$0xff]
        %v524 = vld [vmem:[#allocation5 + $0x2f0] sm:$0xff]
        %v525 = vld [vmem:[#allocation5 + $0x2f8] sm:$0xff]
        %v526 = vld [vmem:[#allocation5 + $0x300] sm:$0xff]
        %v527 = vld [vmem:[#allocation5 + $0x308] sm:$0xff]
        %v528 = vld [vmem:[#allocation5 + $0x310] sm:$0xff]
        %v529 = vld [vmem:[#allocation5 + $0x318] sm:$0xff]
        %v530 = vld [vmem:[#allocation5 + $0x320] sm:$0xff]
        %v531 = vld [vmem:[#allocation5 + $0x328] sm:$0xff]
        %v532 = vld [vmem:[#allocation5 + $0x330] sm:$0xff]
        %v533 = vld [vmem:[#allocation5 + $0x338] sm:$0xff]
        %v534 = vld [vmem:[#allocation5 + $0x340] sm:$0xff]
        %v535 = vld [vmem:[#allocation5 + $0x348] sm:$0xff]
        %v536 = vld [vmem:[#allocation5 + $0x350] sm:$0xff]
        %v537 = vld [vmem:[#allocation5 + $0x358] sm:$0xff]
        %v538 = vld [vmem:[#allocation5 + $0x360] sm:$0xff]
        %v539 = vld [vmem:[#allocation5 + $0x368] sm:$0xff]
        %v540 = vld [vmem:[#allocation5 + $0x370] sm:$0xff]
        %v541 = vld [vmem:[#allocation5 + $0x378] sm:$0xff]
        %v542 = vld [vmem:[#allocation5 + $0x380] sm:$0xff]
        %v543 = vld [vmem:[#allocation5 + $0x388] sm:$0xff]
        %v544 = vld [vmem:[#allocation5 + $0x390] sm:$0xff]
        %v545 = vld [vmem:[#allocation5 + $0x398] sm:$0xff]
        %v546 = vld [vmem:[#allocation5 + $0x3a0] sm:$0xff]
        %v547 = vld [vmem:[#allocation5 + $0x3a8] sm:$0xff]
        %v548 = vld [vmem:[#allocation5 + $0x3b0] sm:$0xff]
        %v549 = vld [vmem:[#allocation5 + $0x3b8] sm:$0xff]
        %v550 = vld [vmem:[#allocation5 + $0x3c0] sm:$0xff]
        %v551 = vld [vmem:[#allocation5 + $0x3c8] sm:$0xff]
        %v552 = vld [vmem:[#allocation5 + $0x3d0] sm:$0xff]
        %v553 = vld [vmem:[#allocation5 + $0x3d8] sm:$0xff]
        %v554 = vld [vmem:[#allocation5 + $0x3e0] sm:$0xff]
        %v555 = vld [vmem:[#allocation5 + $0x3e8] sm:$0xff]
        %v556 = vld [vmem:[#allocation5 + $0x3f0] sm:$0xff]
        %v557 = vld [vmem:[#allocation5 + $0x3f8] sm:$0xff]
        %v558 = vld [vmem:[#allocation7] sm:$0x3]
        %v560 = vperm.slane %v558, 0
        %v561 = vperm.slane %v558, 1
        %v628 = vunpack.c.l.b16 %v366
        %v629 = vunpack.c.h.b16 %v366
        %v630 = vunpack.c.l.b16 %v367
        %v631 = vunpack.c.h.b16 %v367
        %v632 = vunpack.c.l.b16 %v368
        %v633 = vunpack.c.h.b16 %v368
        %v634 = vunpack.c.l.b16 %v369
        %v635 = vunpack.c.h.b16 %v369
        %v636 = vunpack.c.l.b16 %v370
        %v637 = vunpack.c.h.b16 %v370
        %v638 = vunpack.c.l.b16 %v371
        %v639 = vunpack.c.h.b16 %v371
        %v640 = vunpack.c.l.b16 %v372
        %v641 = vunpack.c.h.b16 %v372
        %v642 = vunpack.c.l.b16 %v373
        %v643 = vunpack.c.h.b16 %v373
        %v644 = vunpack.c.l.b16 %v374
        %v645 = vunpack.c.h.b16 %v374
        %v646 = vunpack.c.l.b16 %v375
        %v647 = vunpack.c.h.b16 %v375
        %v648 = vunpack.c.l.b16 %v376
        %v649 = vunpack.c.h.b16 %v376
        %v650 = vunpack.c.l.b16 %v377
        %v651 = vunpack.c.h.b16 %v377
        %v652 = vunpack.c.l.b16 %v378
        %v653 = vunpack.c.h.b16 %v378
        %v654 = vunpack.c.l.b16 %v379
        %v655 = vunpack.c.h.b16 %v379
        %v656 = vunpack.c.l.b16 %v380
        %v657 = vunpack.c.h.b16 %v380
        %v658 = vunpack.c.l.b16 %v381
        %v659 = vunpack.c.h.b16 %v381
        %v660 = vunpack.c.l.b16 %v382
        %v661 = vunpack.c.h.b16 %v382
        %v662 = vunpack.c.l.b16 %v383
        %v663 = vunpack.c.h.b16 %v383
        %v664 = vunpack.c.l.b16 %v384
        %v665 = vunpack.c.h.b16 %v384
        %v666 = vunpack.c.l.b16 %v385
        %v667 = vunpack.c.h.b16 %v385
        %v668 = vunpack.c.l.b16 %v386
        %v669 = vunpack.c.h.b16 %v386
        %v670 = vunpack.c.l.b16 %v387
        %v671 = vunpack.c.h.b16 %v387
        %v672 = vunpack.c.l.b16 %v388
        %v673 = vunpack.c.h.b16 %v388
        %v674 = vunpack.c.l.b16 %v389
        %v675 = vunpack.c.h.b16 %v389
        %v676 = vunpack.c.l.b16 %v390
        %v677 = vunpack.c.h.b16 %v390
        %v678 = vunpack.c.l.b16 %v391
        %v679 = vunpack.c.h.b16 %v391
        %v680 = vunpack.c.l.b16 %v392
        %v681 = vunpack.c.h.b16 %v392
        %v682 = vunpack.c.l.b16 %v393
        %v683 = vunpack.c.h.b16 %v393
        %v684 = vunpack.c.l.b16 %v394
        %v685 = vunpack.c.h.b16 %v394
        %v686 = vunpack.c.l.b16 %v395
        %v687 = vunpack.c.h.b16 %v395
        %v688 = vunpack.c.l.b16 %v396
        %v689 = vunpack.c.h.b16 %v396
        %v690 = vunpack.c.l.b16 %v397
        %v691 = vunpack.c.h.b16 %v397
        %v692 = vunpack.c.l.b16 %v398
        %v693 = vunpack.c.h.b16 %v398
        %v694 = vunpack.c.l.b16 %v399
        %v695 = vunpack.c.h.b16 %v399
        %v696 = vunpack.c.l.b16 %v400
        %v697 = vunpack.c.h.b16 %v400
        %v698 = vunpack.c.l.b16 %v401
        %v699 = vunpack.c.h.b16 %v401
        %v700 = vunpack.c.l.b16 %v402
        %v701 = vunpack.c.h.b16 %v402
        %v702 = vunpack.c.l.b16 %v403
        %v703 = vunpack.c.h.b16 %v403
        %v704 = vunpack.c.l.b16 %v404
        %v705 = vunpack.c.h.b16 %v404
        %v706 = vunpack.c.l.b16 %v405
        %v707 = vunpack.c.h.b16 %v405
        %v708 = vunpack.c.l.b16 %v406
        %v709 = vunpack.c.h.b16 %v406
        %v710 = vunpack.c.l.b16 %v407
        %v711 = vunpack.c.h.b16 %v407
        %v712 = vunpack.c.l.b16 %v408
        %v713 = vunpack.c.h.b16 %v408
        %v714 = vunpack.c.l.b16 %v409
        %v715 = vunpack.c.h.b16 %v409
        %v716 = vunpack.c.l.b16 %v410
        %v717 = vunpack.c.h.b16 %v410
        %v718 = vunpack.c.l.b16 %v411
        %v719 = vunpack.c.h.b16 %v411
        %v720 = vunpack.c.l.b16 %v412
        %v721 = vunpack.c.h.b16 %v412
        %v722 = vunpack.c.l.b16 %v413
        %v723 = vunpack.c.h.b16 %v413
        %v724 = vunpack.c.l.b16 %v414
        %v725 = vunpack.c.h.b16 %v414
        %v726 = vunpack.c.l.b16 %v415
        %v727 = vunpack.c.h.b16 %v415
        %v728 = vunpack.c.l.b16 %v416
        %v729 = vunpack.c.h.b16 %v416
        %v730 = vunpack.c.l.b16 %v417
        %v731 = vunpack.c.h.b16 %v417
        %v732 = vunpack.c.l.b16 %v418
        %v733 = vunpack.c.h.b16 %v418
        %v734 = vunpack.c.l.b16 %v419
        %v735 = vunpack.c.h.b16 %v419
        %v736 = vunpack.c.l.b16 %v420
        %v737 = vunpack.c.h.b16 %v420
        %v738 = vunpack.c.l.b16 %v421
        %v739 = vunpack.c.h.b16 %v421
        %v740 = vunpack.c.l.b16 %v422
        %v741 = vunpack.c.h.b16 %v422
        %v742 = vunpack.c.l.b16 %v423
        %v743 = vunpack.c.h.b16 %v423
        %v744 = vunpack.c.l.b16 %v424
        %v745 = vunpack.c.h.b16 %v424
        %v746 = vunpack.c.l.b16 %v425
        %v747 = vunpack.c.h.b16 %v425
        %v748 = vunpack.c.l.b16 %v426
        %v749 = vunpack.c.h.b16 %v426
        %v750 = vunpack.c.l.b16 %v427
        %v751 = vunpack.c.h.b16 %v427
        %v752 = vunpack.c.l.b16 %v428
        %v753 = vunpack.c.h.b16 %v428
        %v754 = vunpack.c.l.b16 %v429
        %v755 = vunpack.c.h.b16 %v429
        %v756 = vpack.c.b16 %v636, %v628
        %v757 = vpack.c.b16 %v637, %v629
        %v758 = vpack.c.b16 %v638, %v630
        %v759 = vpack.c.b16 %v639, %v631
        %v760 = vpack.c.b16 %v640, %v632
        %v761 = vpack.c.b16 %v641, %v633
        %v762 = vpack.c.b16 %v642, %v634
        %v763 = vpack.c.b16 %v643, %v635
        %v764 = vpack.c.b16 %v652, %v644
        %v765 = vpack.c.b16 %v653, %v645
        %v766 = vpack.c.b16 %v654, %v646
        %v767 = vpack.c.b16 %v655, %v647
        %v768 = vpack.c.b16 %v656, %v648
        %v769 = vpack.c.b16 %v657, %v649
        %v770 = vpack.c.b16 %v658, %v650
        %v771 = vpack.c.b16 %v659, %v651
        %v772 = vpack.c.b16 %v668, %v660
        %v773 = vpack.c.b16 %v669, %v661
        %v774 = vpack.c.b16 %v670, %v662
        %v775 = vpack.c.b16 %v671, %v663
        %v776 = vpack.c.b16 %v672, %v664
        %v777 = vpack.c.b16 %v673, %v665
        %v778 = vpack.c.b16 %v674, %v666
        %v779 = vpack.c.b16 %v675, %v667
        %v780 = vpack.c.b16 %v684, %v676
        %v781 = vpack.c.b16 %v685, %v677
        %v782 = vpack.c.b16 %v686, %v678
        %v783 = vpack.c.b16 %v687, %v679
        %v784 = vpack.c.b16 %v688, %v680
        %v785 = vpack.c.b16 %v689, %v681
        %v786 = vpack.c.b16 %v690, %v682
        %v787 = vpack.c.b16 %v691, %v683
        %v788 = vpack.c.b16 %v700, %v692
        %v789 = vpack.c.b16 %v701, %v693
        %v790 = vpack.c.b16 %v702, %v694
        %v791 = vpack.c.b16 %v703, %v695
        %v792 = vpack.c.b16 %v704, %v696
        %v793 = vpack.c.b16 %v705, %v697
        %v794 = vpack.c.b16 %v706, %v698
        %v795 = vpack.c.b16 %v707, %v699
        %v796 = vpack.c.b16 %v716, %v708
        %v797 = vpack.c.b16 %v717, %v709
        %v798 = vpack.c.b16 %v718, %v710
        %v799 = vpack.c.b16 %v719, %v711
        %v800 = vpack.c.b16 %v720, %v712
        %v801 = vpack.c.b16 %v721, %v713
        %v802 = vpack.c.b16 %v722, %v714
        %v803 = vpack.c.b16 %v723, %v715
        %v804 = vpack.c.b16 %v732, %v724
        %v805 = vpack.c.b16 %v733, %v725
        %v806 = vpack.c.b16 %v734, %v726
        %v807 = vpack.c.b16 %v735, %v727
        %v808 = vpack.c.b16 %v736, %v728
        %v809 = vpack.c.b16 %v737, %v729
        %v810 = vpack.c.b16 %v738, %v730
        %v811 = vpack.c.b16 %v739, %v731
        %v812 = vpack.c.b16 %v748, %v740
        %v813 = vpack.c.b16 %v749, %v741
        %v814 = vpack.c.b16 %v750, %v742
        %v815 = vpack.c.b16 %v751, %v743
        %v816 = vpack.c.b16 %v752, %v744
        %v817 = vpack.c.b16 %v753, %v745
        %v818 = vpack.c.b16 %v754, %v746
        %v819 = vpack.c.b16 %v755, %v747
        %v1012 = vunpack.c.l.b16 %v430
        %v1013 = vunpack.c.h.b16 %v430
        %v1014 = vunpack.c.l.b16 %v431
        %v1015 = vunpack.c.h.b16 %v431
        %v1016 = vunpack.c.l.b16 %v432
        %v1017 = vunpack.c.h.b16 %v432
        %v1018 = vunpack.c.l.b16 %v433
        %v1019 = vunpack.c.h.b16 %v433
        %v1020 = vunpack.c.l.b16 %v434
        %v1021 = vunpack.c.h.b16 %v434
        %v1022 = vunpack.c.l.b16 %v435
        %v1023 = vunpack.c.h.b16 %v435
        %v1024 = vunpack.c.l.b16 %v436
        %v1025 = vunpack.c.h.b16 %v436
        %v1026 = vunpack.c.l.b16 %v437
        %v1027 = vunpack.c.h.b16 %v437
        %v1028 = vunpack.c.l.b16 %v438
        %v1029 = vunpack.c.h.b16 %v438
        %v1030 = vunpack.c.l.b16 %v439
        %v1031 = vunpack.c.h.b16 %v439
        %v1032 = vunpack.c.l.b16 %v440
        %v1033 = vunpack.c.h.b16 %v440
        %v1034 = vunpack.c.l.b16 %v441
        %v1035 = vunpack.c.h.b16 %v441
        %v1036 = vunpack.c.l.b16 %v442
        %v1037 = vunpack.c.h.b16 %v442
        %v1038 = vunpack.c.l.b16 %v443
        %v1039 = vunpack.c.h.b16 %v443
        %v1040 = vunpack.c.l.b16 %v444
        %v1041 = vunpack.c.h.b16 %v444
        %v1042 = vunpack.c.l.b16 %v445
        %v1043 = vunpack.c.h.b16 %v445
        %v1044 = vunpack.c.l.b16 %v446
        %v1045 = vunpack.c.h.b16 %v446
        %v1046 = vunpack.c.l.b16 %v447
        %v1047 = vunpack.c.h.b16 %v447
        %v1048 = vunpack.c.l.b16 %v448
        %v1049 = vunpack.c.h.b16 %v448
        %v1050 = vunpack.c.l.b16 %v449
        %v1051 = vunpack.c.h.b16 %v449
        %v1052 = vunpack.c.l.b16 %v450
        %v1053 = vunpack.c.h.b16 %v450
        %v1054 = vunpack.c.l.b16 %v451
        %v1055 = vunpack.c.h.b16 %v451
        %v1056 = vunpack.c.l.b16 %v452
        %v1057 = vunpack.c.h.b16 %v452
        %v1058 = vunpack.c.l.b16 %v453
        %v1059 = vunpack.c.h.b16 %v453
        %v1060 = vunpack.c.l.b16 %v454
        %v1061 = vunpack.c.h.b16 %v454
        %v1062 = vunpack.c.l.b16 %v455
        %v1063 = vunpack.c.h.b16 %v455
        %v1064 = vunpack.c.l.b16 %v456
        %v1065 = vunpack.c.h.b16 %v456
        %v1066 = vunpack.c.l.b16 %v457
        %v1067 = vunpack.c.h.b16 %v457
        %v1068 = vunpack.c.l.b16 %v458
        %v1069 = vunpack.c.h.b16 %v458
        %v1070 = vunpack.c.l.b16 %v459
        %v1071 = vunpack.c.h.b16 %v459
        %v1072 = vunpack.c.l.b16 %v460
        %v1073 = vunpack.c.h.b16 %v460
        %v1074 = vunpack.c.l.b16 %v461
        %v1075 = vunpack.c.h.b16 %v461
        %v1076 = vunpack.c.l.b16 %v462
        %v1077 = vunpack.c.h.b16 %v462
        %v1078 = vunpack.c.l.b16 %v463
        %v1079 = vunpack.c.h.b16 %v463
        %v1080 = vunpack.c.l.b16 %v464
        %v1081 = vunpack.c.h.b16 %v464
        %v1082 = vunpack.c.l.b16 %v465
        %v1083 = vunpack.c.h.b16 %v465
        %v1084 = vunpack.c.l.b16 %v466
        %v1085 = vunpack.c.h.b16 %v466
        %v1086 = vunpack.c.l.b16 %v467
        %v1087 = vunpack.c.h.b16 %v467
        %v1088 = vunpack.c.l.b16 %v468
        %v1089 = vunpack.c.h.b16 %v468
        %v1090 = vunpack.c.l.b16 %v469
        %v1091 = vunpack.c.h.b16 %v469
        %v1092 = vunpack.c.l.b16 %v470
        %v1093 = vunpack.c.h.b16 %v470
        %v1094 = vunpack.c.l.b16 %v471
        %v1095 = vunpack.c.h.b16 %v471
        %v1096 = vunpack.c.l.b16 %v472
        %v1097 = vunpack.c.h.b16 %v472
        %v1098 = vunpack.c.l.b16 %v473
        %v1099 = vunpack.c.h.b16 %v473
        %v1100 = vunpack.c.l.b16 %v474
        %v1101 = vunpack.c.h.b16 %v474
        %v1102 = vunpack.c.l.b16 %v475
        %v1103 = vunpack.c.h.b16 %v475
        %v1104 = vunpack.c.l.b16 %v476
        %v1105 = vunpack.c.h.b16 %v476
        %v1106 = vunpack.c.l.b16 %v477
        %v1107 = vunpack.c.h.b16 %v477
        %v1108 = vunpack.c.l.b16 %v478
        %v1109 = vunpack.c.h.b16 %v478
        %v1110 = vunpack.c.l.b16 %v479
        %v1111 = vunpack.c.h.b16 %v479
        %v1112 = vunpack.c.l.b16 %v480
        %v1113 = vunpack.c.h.b16 %v480
        %v1114 = vunpack.c.l.b16 %v481
        %v1115 = vunpack.c.h.b16 %v481
        %v1116 = vunpack.c.l.b16 %v482
        %v1117 = vunpack.c.h.b16 %v482
        %v1118 = vunpack.c.l.b16 %v483
        %v1119 = vunpack.c.h.b16 %v483
        %v1120 = vunpack.c.l.b16 %v484
        %v1121 = vunpack.c.h.b16 %v484
        %v1122 = vunpack.c.l.b16 %v485
        %v1123 = vunpack.c.h.b16 %v485
        %v1124 = vunpack.c.l.b16 %v486
        %v1125 = vunpack.c.h.b16 %v486
        %v1126 = vunpack.c.l.b16 %v487
        %v1127 = vunpack.c.h.b16 %v487
        %v1128 = vunpack.c.l.b16 %v488
        %v1129 = vunpack.c.h.b16 %v488
        %v1130 = vunpack.c.l.b16 %v489
        %v1131 = vunpack.c.h.b16 %v489
        %v1132 = vunpack.c.l.b16 %v490
        %v1133 = vunpack.c.h.b16 %v490
        %v1134 = vunpack.c.l.b16 %v491
        %v1135 = vunpack.c.h.b16 %v491
        %v1136 = vunpack.c.l.b16 %v492
        %v1137 = vunpack.c.h.b16 %v492
        %v1138 = vunpack.c.l.b16 %v493
        %v1139 = vunpack.c.h.b16 %v493
        %v1140 = vunpack.c.l.b16 %v494
        %v1141 = vunpack.c.h.b16 %v494
        %v1142 = vunpack.c.l.b16 %v495
        %v1143 = vunpack.c.h.b16 %v495
        %v1144 = vunpack.c.l.b16 %v496
        %v1145 = vunpack.c.h.b16 %v496
        %v1146 = vunpack.c.l.b16 %v497
        %v1147 = vunpack.c.h.b16 %v497
        %v1148 = vunpack.c.l.b16 %v498
        %v1149 = vunpack.c.h.b16 %v498
        %v1150 = vunpack.c.l.b16 %v499
        %v1151 = vunpack.c.h.b16 %v499
        %v1152 = vunpack.c.l.b16 %v500
        %v1153 = vunpack.c.h.b16 %v500
        %v1154 = vunpack.c.l.b16 %v501
        %v1155 = vunpack.c.h.b16 %v501
        %v1156 = vunpack.c.l.b16 %v502
        %v1157 = vunpack.c.h.b16 %v502
        %v1158 = vunpack.c.l.b16 %v503
        %v1159 = vunpack.c.h.b16 %v503
        %v1160 = vunpack.c.l.b16 %v504
        %v1161 = vunpack.c.h.b16 %v504
        %v1162 = vunpack.c.l.b16 %v505
        %v1163 = vunpack.c.h.b16 %v505
        %v1164 = vunpack.c.l.b16 %v506
        %v1165 = vunpack.c.h.b16 %v506
        %v1166 = vunpack.c.l.b16 %v507
        %v1167 = vunpack.c.h.b16 %v507
        %v1168 = vunpack.c.l.b16 %v508
        %v1169 = vunpack.c.h.b16 %v508
        %v1170 = vunpack.c.l.b16 %v509
        %v1171 = vunpack.c.h.b16 %v509
        %v1172 = vunpack.c.l.b16 %v510
        %v1173 = vunpack.c.h.b16 %v510
        %v1174 = vunpack.c.l.b16 %v511
        %v1175 = vunpack.c.h.b16 %v511
        %v1176 = vunpack.c.l.b16 %v512
        %v1177 = vunpack.c.h.b16 %v512
        %v1178 = vunpack.c.l.b16 %v513
        %v1179 = vunpack.c.h.b16 %v513
        %v1180 = vunpack.c.l.b16 %v514
        %v1181 = vunpack.c.h.b16 %v514
        %v1182 = vunpack.c.l.b16 %v515
        %v1183 = vunpack.c.h.b16 %v515
        %v1184 = vunpack.c.l.b16 %v516
        %v1185 = vunpack.c.h.b16 %v516
        %v1186 = vunpack.c.l.b16 %v517
        %v1187 = vunpack.c.h.b16 %v517
        %v1188 = vunpack.c.l.b16 %v518
        %v1189 = vunpack.c.h.b16 %v518
        %v1190 = vunpack.c.l.b16 %v519
        %v1191 = vunpack.c.h.b16 %v519
        %v1192 = vunpack.c.l.b16 %v520
        %v1193 = vunpack.c.h.b16 %v520
        %v1194 = vunpack.c.l.b16 %v521
        %v1195 = vunpack.c.h.b16 %v521
        %v1196 = vunpack.c.l.b16 %v522
        %v1197 = vunpack.c.h.b16 %v522
        %v1198 = vunpack.c.l.b16 %v523
        %v1199 = vunpack.c.h.b16 %v523
        %v1200 = vunpack.c.l.b16 %v524
        %v1201 = vunpack.c.h.b16 %v524
        %v1202 = vunpack.c.l.b16 %v525
        %v1203 = vunpack.c.h.b16 %v525
        %v1204 = vunpack.c.l.b16 %v526
        %v1205 = vunpack.c.h.b16 %v526
        %v1206 = vunpack.c.l.b16 %v527
        %v1207 = vunpack.c.h.b16 %v527
        %v1208 = vunpack.c.l.b16 %v528
        %v1209 = vunpack.c.h.b16 %v528
        %v1210 = vunpack.c.l.b16 %v529
        %v1211 = vunpack.c.h.b16 %v529
        %v1212 = vunpack.c.l.b16 %v530
        %v1213 = vunpack.c.h.b16 %v530
        %v1214 = vunpack.c.l.b16 %v531
        %v1215 = vunpack.c.h.b16 %v531
        %v1216 = vunpack.c.l.b16 %v532
        %v1217 = vunpack.c.h.b16 %v532
        %v1218 = vunpack.c.l.b16 %v533
        %v1219 = vunpack.c.h.b16 %v533
        %v1220 = vunpack.c.l.b16 %v534
        %v1221 = vunpack.c.h.b16 %v534
        %v1222 = vunpack.c.l.b16 %v535
        %v1223 = vunpack.c.h.b16 %v535
        %v1224 = vunpack.c.l.b16 %v536
        %v1225 = vunpack.c.h.b16 %v536
        %v1226 = vunpack.c.l.b16 %v537
        %v1227 = vunpack.c.h.b16 %v537
        %v1228 = vunpack.c.l.b16 %v538
        %v1229 = vunpack.c.h.b16 %v538
        %v1230 = vunpack.c.l.b16 %v539
        %v1231 = vunpack.c.h.b16 %v539
        %v1232 = vunpack.c.l.b16 %v540
        %v1233 = vunpack.c.h.b16 %v540
        %v1234 = vunpack.c.l.b16 %v541
        %v1235 = vunpack.c.h.b16 %v541
        %v1236 = vunpack.c.l.b16 %v542
        %v1237 = vunpack.c.h.b16 %v542
        %v1238 = vunpack.c.l.b16 %v543
        %v1239 = vunpack.c.h.b16 %v543
        %v1240 = vunpack.c.l.b16 %v544
        %v1241 = vunpack.c.h.b16 %v544
        %v1242 = vunpack.c.l.b16 %v545
        %v1243 = vunpack.c.h.b16 %v545
        %v1244 = vunpack.c.l.b16 %v546
        %v1245 = vunpack.c.h.b16 %v546
        %v1246 = vunpack.c.l.b16 %v547
        %v1247 = vunpack.c.h.b16 %v547
        %v1248 = vunpack.c.l.b16 %v548
        %v1249 = vunpack.c.h.b16 %v548
        %v1250 = vunpack.c.l.b16 %v549
        %v1251 = vunpack.c.h.b16 %v549
        %v1252 = vunpack.c.l.b16 %v550
        %v1253 = vunpack.c.h.b16 %v550
        %v1254 = vunpack.c.l.b16 %v551
        %v1255 = vunpack.c.h.b16 %v551
        %v1256 = vunpack.c.l.b16 %v552
        %v1257 = vunpack.c.h.b16 %v552
        %v1258 = vunpack.c.l.b16 %v553
        %v1259 = vunpack.c.h.b16 %v553
        %v1260 = vunpack.c.l.b16 %v554
        %v1261 = vunpack.c.h.b16 %v554
        %v1262 = vunpack.c.l.b16 %v555
        %v1263 = vunpack.c.h.b16 %v555
        %v1264 = vunpack.c.l.b16 %v556
        %v1265 = vunpack.c.h.b16 %v556
        %v1266 = vunpack.c.l.b16 %v557
        %v1267 = vunpack.c.h.b16 %v557
        %v1268 = vpack.c.b16 %v1014, %v1012
        %v1269 = vpack.c.b16 %v1015, %v1013
        %v1270 = vpack.c.b16 %v1018, %v1016
        %v1271 = vpack.c.b16 %v1019, %v1017
        %v1272 = vpack.c.b16 %v1022, %v1020
        %v1273 = vpack.c.b16 %v1023, %v1021
        %v1274 = vpack.c.b16 %v1026, %v1024
        %v1275 = vpack.c.b16 %v1027, %v1025
        %v1276 = vpack.c.b16 %v1030, %v1028
        %v1277 = vpack.c.b16 %v1031, %v1029
        %v1278 = vpack.c.b16 %v1034, %v1032
        %v1279 = vpack.c.b16 %v1035, %v1033
        %v1280 = vpack.c.b16 %v1038, %v1036
        %v1281 = vpack.c.b16 %v1039, %v1037
        %v1282 = vpack.c.b16 %v1042, %v1040
        %v1283 = vpack.c.b16 %v1043, %v1041
        %v1284 = vpack.c.b16 %v1046, %v1044
        %v1285 = vpack.c.b16 %v1047, %v1045
        %v1286 = vpack.c.b16 %v1050, %v1048
        %v1287 = vpack.c.b16 %v1051, %v1049
        %v1288 = vpack.c.b16 %v1054, %v1052
        %v1289 = vpack.c.b16 %v1055, %v1053
        %v1290 = vpack.c.b16 %v1058, %v1056
        %v1291 = vpack.c.b16 %v1059, %v1057
        %v1292 = vpack.c.b16 %v1062, %v1060
        %v1293 = vpack.c.b16 %v1063, %v1061
        %v1294 = vpack.c.b16 %v1066, %v1064
        %v1295 = vpack.c.b16 %v1067, %v1065
        %v1296 = vpack.c.b16 %v1070, %v1068
        %v1297 = vpack.c.b16 %v1071, %v1069
        %v1298 = vpack.c.b16 %v1074, %v1072
        %v1299 = vpack.c.b16 %v1075, %v1073
        %v1300 = vpack.c.b16 %v1078, %v1076
        %v1301 = vpack.c.b16 %v1079, %v1077
        %v1302 = vpack.c.b16 %v1082, %v1080
        %v1303 = vpack.c.b16 %v1083, %v1081
        %v1304 = vpack.c.b16 %v1086, %v1084
        %v1305 = vpack.c.b16 %v1087, %v1085
        %v1306 = vpack.c.b16 %v1090, %v1088
        %v1307 = vpack.c.b16 %v1091, %v1089
        %v1308 = vpack.c.b16 %v1094, %v1092
        %v1309 = vpack.c.b16 %v1095, %v1093
        %v1310 = vpack.c.b16 %v1098, %v1096
        %v1311 = vpack.c.b16 %v1099, %v1097
        %v1312 = vpack.c.b16 %v1102, %v1100
        %v1313 = vpack.c.b16 %v1103, %v1101
        %v1314 = vpack.c.b16 %v1106, %v1104
        %v1315 = vpack.c.b16 %v1107, %v1105
        %v1316 = vpack.c.b16 %v1110, %v1108
        %v1317 = vpack.c.b16 %v1111, %v1109
        %v1318 = vpack.c.b16 %v1114, %v1112
        %v1319 = vpack.c.b16 %v1115, %v1113
        %v1320 = vpack.c.b16 %v1118, %v1116
        %v1321 = vpack.c.b16 %v1119, %v1117
        %v1322 = vpack.c.b16 %v1122, %v1120
        %v1323 = vpack.c.b16 %v1123, %v1121
        %v1324 = vpack.c.b16 %v1126, %v1124
        %v1325 = vpack.c.b16 %v1127, %v1125
        %v1326 = vpack.c.b16 %v1130, %v1128
        %v1327 = vpack.c.b16 %v1131, %v1129
        %v1328 = vpack.c.b16 %v1134, %v1132
        %v1329 = vpack.c.b16 %v1135, %v1133
        %v1330 = vpack.c.b16 %v1138, %v1136
        %v1331 = vpack.c.b16 %v1139, %v1137
        %v1332 = vpack.c.b16 %v1142, %v1140
        %v1333 = vpack.c.b16 %v1143, %v1141
        %v1334 = vpack.c.b16 %v1146, %v1144
        %v1335 = vpack.c.b16 %v1147, %v1145
        %v1336 = vpack.c.b16 %v1150, %v1148
        %v1337 = vpack.c.b16 %v1151, %v1149
        %v1338 = vpack.c.b16 %v1154, %v1152
        %v1339 = vpack.c.b16 %v1155, %v1153
        %v1340 = vpack.c.b16 %v1158, %v1156
        %v1341 = vpack.c.b16 %v1159, %v1157
        %v1342 = vpack.c.b16 %v1162, %v1160
        %v1343 = vpack.c.b16 %v1163, %v1161
        %v1344 = vpack.c.b16 %v1166, %v1164
        %v1345 = vpack.c.b16 %v1167, %v1165
        %v1346 = vpack.c.b16 %v1170, %v1168
        %v1347 = vpack.c.b16 %v1171, %v1169
        %v1348 = vpack.c.b16 %v1174, %v1172
        %v1349 = vpack.c.b16 %v1175, %v1173
        %v1350 = vpack.c.b16 %v1178, %v1176
        %v1351 = vpack.c.b16 %v1179, %v1177
        %v1352 = vpack.c.b16 %v1182, %v1180
        %v1353 = vpack.c.b16 %v1183, %v1181
        %v1354 = vpack.c.b16 %v1186, %v1184
        %v1355 = vpack.c.b16 %v1187, %v1185
        %v1356 = vpack.c.b16 %v1190, %v1188
        %v1357 = vpack.c.b16 %v1191, %v1189
        %v1358 = vpack.c.b16 %v1194, %v1192
        %v1359 = vpack.c.b16 %v1195, %v1193
        %v1360 = vpack.c.b16 %v1198, %v1196
        %v1361 = vpack.c.b16 %v1199, %v1197
        %v1362 = vpack.c.b16 %v1202, %v1200
        %v1363 = vpack.c.b16 %v1203, %v1201
        %v1364 = vpack.c.b16 %v1206, %v1204
        %v1365 = vpack.c.b16 %v1207, %v1205
        %v1366 = vpack.c.b16 %v1210, %v1208
        %v1367 = vpack.c.b16 %v1211, %v1209
        %v1368 = vpack.c.b16 %v1214, %v1212
        %v1369 = vpack.c.b16 %v1215, %v1213
        %v1370 = vpack.c.b16 %v1218, %v1216
        %v1371 = vpack.c.b16 %v1219, %v1217
        %v1372 = vpack.c.b16 %v1222, %v1220
        %v1373 = vpack.c.b16 %v1223, %v1221
        %v1374 = vpack.c.b16 %v1226, %v1224
        %v1375 = vpack.c.b16 %v1227, %v1225
        %v1376 = vpack.c.b16 %v1230, %v1228
        %v1377 = vpack.c.b16 %v1231, %v1229
        %v1378 = vpack.c.b16 %v1234, %v1232
        %v1379 = vpack.c.b16 %v1235, %v1233
        %v1380 = vpack.c.b16 %v1238, %v1236
        %v1381 = vpack.c.b16 %v1239, %v1237
        %v1382 = vpack.c.b16 %v1242, %v1240
        %v1383 = vpack.c.b16 %v1243, %v1241
        %v1384 = vpack.c.b16 %v1246, %v1244
        %v1385 = vpack.c.b16 %v1247, %v1245
        %v1386 = vpack.c.b16 %v1250, %v1248
        %v1387 = vpack.c.b16 %v1251, %v1249
        %v1388 = vpack.c.b16 %v1254, %v1252
        %v1389 = vpack.c.b16 %v1255, %v1253
        %v1390 = vpack.c.b16 %v1258, %v1256
        %v1391 = vpack.c.b16 %v1259, %v1257
        %v1392 = vpack.c.b16 %v1262, %v1260
        %v1393 = vpack.c.b16 %v1263, %v1261
        %v1394 = vpack.c.b16 %v1266, %v1264
        %v1395 = vpack.c.b16 %v1267, %v1265
        %1524 = vmatpush.bf16.msra.mxu0 %v1282
        %1525 = vmatpush.bf16.msra.mxu0 %v1280
        %1526 = vmatpush.bf16.msra.mxu0 %v1278
        %1527 = vmatpush.bf16.msra.mxu0 %v1276
        %1528 = vmatpush.bf16.msra.mxu0 %v1274
        %1529 = vmatpush.bf16.msra.mxu0 %v1272
        %1530 = vmatpush.bf16.msra.mxu0 %v1270
        %1531 = vmatpush.bf16.msra.mxu0 %v1268
        %1532 = vmatmul.bf16.gmra.mxu0 %v756
        %v1533 = vpop.f32.mrf.mxu0
        %v1534 = vadd.f32 %v560, %v1533
        %v1535 = vpop.f32.mrf.mxu0
        %v1536 = vadd.f32 %v560, %v1535
        %1537 = vmatmul.bf16.gmra.mxu0 %v764
        %v1538 = vpop.f32.mrf.mxu0
        %v1539 = vadd.f32 %v560, %v1538
        %v1540 = vpop.f32.mrf.mxu0
        %v1541 = vadd.f32 %v560, %v1540
        %1542 = vmatmul.bf16.gmra.mxu0 %v772
        %v1543 = vpop.f32.mrf.mxu0
        %v1544 = vadd.f32 %v560, %v1543
        %v1545 = vpop.f32.mrf.mxu0
        %v1546 = vadd.f32 %v560, %v1545
        %1547 = vmatmul.bf16.gmra.mxu0 %v780
        %v1548 = vpop.f32.mrf.mxu0
        %v1549 = vadd.f32 %v560, %v1548
        %v1550 = vpop.f32.mrf.mxu0
        %v1551 = vadd.f32 %v560, %v1550
        %1552 = vmatmul.bf16.gmra.mxu0 %v788
        %v1553 = vpop.f32.mrf.mxu0
        %v1554 = vadd.f32 %v560, %v1553
        %v1555 = vpop.f32.mrf.mxu0
        %v1556 = vadd.f32 %v560, %v1555
        %1557 = vmatmul.bf16.gmra.mxu0 %v796
        %v1558 = vpop.f32.mrf.mxu0
        %v1559 = vadd.f32 %v560, %v1558
        %v1560 = vpop.f32.mrf.mxu0
        %v1561 = vadd.f32 %v560, %v1560
        %1562 = vmatmul.bf16.gmra.mxu0 %v804
        %v1563 = vpop.f32.mrf.mxu0
        %v1564 = vadd.f32 %v560, %v1563
        %v1565 = vpop.f32.mrf.mxu0
        %v1566 = vadd.f32 %v560, %v1565
        %1567 = vmatmul.bf16.gmra.mxu0 %v812
        %v1568 = vpop.f32.mrf.mxu0
        %v1569 = vadd.f32 %v560, %v1568
        %v1570 = vpop.f32.mrf.mxu0
        %v1571 = vadd.f32 %v560, %v1570
        %1572 = vdwg.mxu0
        %1573 = vmatpush.bf16.msra.mxu0 %v1298
        %1574 = vmatpush.bf16.msra.mxu0 %v1296
        %1575 = vmatpush.bf16.msra.mxu0 %v1294
        %1576 = vmatpush.bf16.msra.mxu0 %v1292
        %1577 = vmatpush.bf16.msra.mxu0 %v1290
        %1578 = vmatpush.bf16.msra.mxu0 %v1288
        %1579 = vmatpush.bf16.msra.mxu0 %v1286
        %1580 = vmatpush.bf16.msra.mxu0 %v1284
        %1581 = vmatmul.bf16.gmra.mxu0 %v757
        %v1582 = vpop.f32.mrf.mxu0
        %v1583 = vadd.f32 %v1534, %v1582
        %v1584 = vpop.f32.mrf.mxu0
        %v1585 = vadd.f32 %v1536, %v1584
        %1586 = vmatmul.bf16.gmra.mxu0 %v765
        %v1587 = vpop.f32.mrf.mxu0
        %v1588 = vadd.f32 %v1539, %v1587
        %v1589 = vpop.f32.mrf.mxu0
        %v1590 = vadd.f32 %v1541, %v1589
        %1591 = vmatmul.bf16.gmra.mxu0 %v773
        %v1592 = vpop.f32.mrf.mxu0
        %v1593 = vadd.f32 %v1544, %v1592
        %v1594 = vpop.f32.mrf.mxu0
        %v1595 = vadd.f32 %v1546, %v1594
        %1596 = vmatmul.bf16.gmra.mxu0 %v781
        %v1597 = vpop.f32.mrf.mxu0
        %v1598 = vadd.f32 %v1549, %v1597
        %v1599 = vpop.f32.mrf.mxu0
        %v1600 = vadd.f32 %v1551, %v1599
        %1601 = vmatmul.bf16.gmra.mxu0 %v789
        %v1602 = vpop.f32.mrf.mxu0
        %v1603 = vadd.f32 %v1554, %v1602
        %v1604 = vpop.f32.mrf.mxu0
        %v1605 = vadd.f32 %v1556, %v1604
        %1606 = vmatmul.bf16.gmra.mxu0 %v797
        %v1607 = vpop.f32.mrf.mxu0
        %v1608 = vadd.f32 %v1559, %v1607
        %v1609 = vpop.f32.mrf.mxu0
        %v1610 = vadd.f32 %v1561, %v1609
        %1611 = vmatmul.bf16.gmra.mxu0 %v805
        %v1612 = vpop.f32.mrf.mxu0
        %v1613 = vadd.f32 %v1564, %v1612
        %v1614 = vpop.f32.mrf.mxu0
        %v1615 = vadd.f32 %v1566, %v1614
        %1616 = vmatmul.bf16.gmra.mxu0 %v813
        %v1617 = vpop.f32.mrf.mxu0
        %v1618 = vadd.f32 %v1569, %v1617
        %v1619 = vpop.f32.mrf.mxu0
        %v1620 = vadd.f32 %v1571, %v1619
        %1621 = vdwg.mxu0
        %1622 = vmatpush.bf16.msra.mxu0 %v1314
        %1623 = vmatpush.bf16.msra.mxu0 %v1312
        %1624 = vmatpush.bf16.msra.mxu0 %v1310
        %1625 = vmatpush.bf16.msra.mxu0 %v1308
        %1626 = vmatpush.bf16.msra.mxu0 %v1306
        %1627 = vmatpush.bf16.msra.mxu0 %v1304
        %1628 = vmatpush.bf16.msra.mxu0 %v1302
        %1629 = vmatpush.bf16.msra.mxu0 %v1300
        %1630 = vmatmul.bf16.gmra.mxu0 %v758
        %v1631 = vpop.f32.mrf.mxu0
        %v1632 = vadd.f32 %v1583, %v1631
        %v1633 = vpop.f32.mrf.mxu0
        %v1634 = vadd.f32 %v1585, %v1633
        %1635 = vmatmul.bf16.gmra.mxu0 %v766
        %v1636 = vpop.f32.mrf.mxu0
        %v1637 = vadd.f32 %v1588, %v1636
        %v1638 = vpop.f32.mrf.mxu0
        %v1639 = vadd.f32 %v1590, %v1638
        %1640 = vmatmul.bf16.gmra.mxu0 %v774
        %v1641 = vpop.f32.mrf.mxu0
        %v1642 = vadd.f32 %v1593, %v1641
        %v1643 = vpop.f32.mrf.mxu0
        %v1644 = vadd.f32 %v1595, %v1643
        %1645 = vmatmul.bf16.gmra.mxu0 %v782
        %v1646 = vpop.f32.mrf.mxu0
        %v1647 = vadd.f32 %v1598, %v1646
        %v1648 = vpop.f32.mrf.mxu0
        %v1649 = vadd.f32 %v1600, %v1648
        %1650 = vmatmul.bf16.gmra.mxu0 %v790
        %v1651 = vpop.f32.mrf.mxu0
        %v1652 = vadd.f32 %v1603, %v1651
        %v1653 = vpop.f32.mrf.mxu0
        %v1654 = vadd.f32 %v1605, %v1653
        %1655 = vmatmul.bf16.gmra.mxu0 %v798
        %v1656 = vpop.f32.mrf.mxu0
        %v1657 = vadd.f32 %v1608, %v1656
        %v1658 = vpop.f32.mrf.mxu0
        %v1659 = vadd.f32 %v1610, %v1658
        %1660 = vmatmul.bf16.gmra.mxu0 %v806
        %v1661 = vpop.f32.mrf.mxu0
        %v1662 = vadd.f32 %v1613, %v1661
        %v1663 = vpop.f32.mrf.mxu0
        %v1664 = vadd.f32 %v1615, %v1663
        %1665 = vmatmul.bf16.gmra.mxu0 %v814
        %v1666 = vpop.f32.mrf.mxu0
        %v1667 = vadd.f32 %v1618, %v1666
        %v1668 = vpop.f32.mrf.mxu0
        %v1669 = vadd.f32 %v1620, %v1668
        %1670 = vdwg.mxu0
        %1671 = vmatpush.bf16.msra.mxu0 %v1330
        %1672 = vmatpush.bf16.msra.mxu0 %v1328
        %1673 = vmatpush.bf16.msra.mxu0 %v1326
        %1674 = vmatpush.bf16.msra.mxu0 %v1324
        %1675 = vmatpush.bf16.msra.mxu0 %v1322
        %1676 = vmatpush.bf16.msra.mxu0 %v1320
        %1677 = vmatpush.bf16.msra.mxu0 %v1318
        %1678 = vmatpush.bf16.msra.mxu0 %v1316
        %1679 = vmatmul.bf16.gmra.mxu0 %v759
        %v1680 = vpop.f32.mrf.mxu0
        %v1681 = vadd.f32 %v1632, %v1680
        %v1682 = vpop.f32.mrf.mxu0
        %v1683 = vadd.f32 %v1634, %v1682
        %1684 = vmatmul.bf16.gmra.mxu0 %v767
        %v1685 = vpop.f32.mrf.mxu0
        %v1686 = vadd.f32 %v1637, %v1685
        %v1687 = vpop.f32.mrf.mxu0
        %v1688 = vadd.f32 %v1639, %v1687
        %1689 = vmatmul.bf16.gmra.mxu0 %v775
        %v1690 = vpop.f32.mrf.mxu0
        %v1691 = vadd.f32 %v1642, %v1690
        %v1692 = vpop.f32.mrf.mxu0
        %v1693 = vadd.f32 %v1644, %v1692
        %1694 = vmatmul.bf16.gmra.mxu0 %v783
        %v1695 = vpop.f32.mrf.mxu0
        %v1696 = vadd.f32 %v1647, %v1695
        %v1697 = vpop.f32.mrf.mxu0
        %v1698 = vadd.f32 %v1649, %v1697
        %1699 = vmatmul.bf16.gmra.mxu0 %v791
        %v1700 = vpop.f32.mrf.mxu0
        %v1701 = vadd.f32 %v1652, %v1700
        %v1702 = vpop.f32.mrf.mxu0
        %v1703 = vadd.f32 %v1654, %v1702
        %1704 = vmatmul.bf16.gmra.mxu0 %v799
        %v1705 = vpop.f32.mrf.mxu0
        %v1706 = vadd.f32 %v1657, %v1705
        %v1707 = vpop.f32.mrf.mxu0
        %v1708 = vadd.f32 %v1659, %v1707
        %1709 = vmatmul.bf16.gmra.mxu0 %v807
        %v1710 = vpop.f32.mrf.mxu0
        %v1711 = vadd.f32 %v1662, %v1710
        %v1712 = vpop.f32.mrf.mxu0
        %v1713 = vadd.f32 %v1664, %v1712
        %1714 = vmatmul.bf16.gmra.mxu0 %v815
        %v1715 = vpop.f32.mrf.mxu0
        %v1716 = vadd.f32 %v1667, %v1715
        %v1717 = vpop.f32.mrf.mxu0
        %v1718 = vadd.f32 %v1669, %v1717
        %1719 = vdwg.mxu0
        %1720 = vmatpush.bf16.msra.mxu0 %v1346
        %1721 = vmatpush.bf16.msra.mxu0 %v1344
        %1722 = vmatpush.bf16.msra.mxu0 %v1342
        %1723 = vmatpush.bf16.msra.mxu0 %v1340
        %1724 = vmatpush.bf16.msra.mxu0 %v1338
        %1725 = vmatpush.bf16.msra.mxu0 %v1336
        %1726 = vmatpush.bf16.msra.mxu0 %v1334
        %1727 = vmatpush.bf16.msra.mxu0 %v1332
        %1728 = vmatmul.bf16.gmra.mxu0 %v760
        %v1729 = vpop.f32.mrf.mxu0
        %v1730 = vadd.f32 %v1681, %v1729
        %v1731 = vpop.f32.mrf.mxu0
        %v1732 = vadd.f32 %v1683, %v1731
        %1733 = vmatmul.bf16.gmra.mxu0 %v768
        %v1734 = vpop.f32.mrf.mxu0
        %v1735 = vadd.f32 %v1686, %v1734
        %v1736 = vpop.f32.mrf.mxu0
        %v1737 = vadd.f32 %v1688, %v1736
        %1738 = vmatmul.bf16.gmra.mxu0 %v776
        %v1739 = vpop.f32.mrf.mxu0
        %v1740 = vadd.f32 %v1691, %v1739
        %v1741 = vpop.f32.mrf.mxu0
        %v1742 = vadd.f32 %v1693, %v1741
        %1743 = vmatmul.bf16.gmra.mxu0 %v784
        %v1744 = vpop.f32.mrf.mxu0
        %v1745 = vadd.f32 %v1696, %v1744
        %v1746 = vpop.f32.mrf.mxu0
        %v1747 = vadd.f32 %v1698, %v1746
        %1748 = vmatmul.bf16.gmra.mxu0 %v792
        %v1749 = vpop.f32.mrf.mxu0
        %v1750 = vadd.f32 %v1701, %v1749
        %v1751 = vpop.f32.mrf.mxu0
        %v1752 = vadd.f32 %v1703, %v1751
        %1753 = vmatmul.bf16.gmra.mxu0 %v800
        %v1754 = vpop.f32.mrf.mxu0
        %v1755 = vadd.f32 %v1706, %v1754
        %v1756 = vpop.f32.mrf.mxu0
        %v1757 = vadd.f32 %v1708, %v1756
        %1758 = vmatmul.bf16.gmra.mxu0 %v808
        %v1759 = vpop.f32.mrf.mxu0
        %v1760 = vadd.f32 %v1711, %v1759
        %v1761 = vpop.f32.mrf.mxu0
        %v1762 = vadd.f32 %v1713, %v1761
        %1763 = vmatmul.bf16.gmra.mxu0 %v816
        %v1764 = vpop.f32.mrf.mxu0
        %v1765 = vadd.f32 %v1716, %v1764
        %v1766 = vpop.f32.mrf.mxu0
        %v1767 = vadd.f32 %v1718, %v1766
        %1768 = vdwg.mxu0
        %1769 = vmatpush.bf16.msra.mxu0 %v1362
        %1770 = vmatpush.bf16.msra.mxu0 %v1360
        %1771 = vmatpush.bf16.msra.mxu0 %v1358
        %1772 = vmatpush.bf16.msra.mxu0 %v1356
        %1773 = vmatpush.bf16.msra.mxu0 %v1354
        %1774 = vmatpush.bf16.msra.mxu0 %v1352
        %1775 = vmatpush.bf16.msra.mxu0 %v1350
        %1776 = vmatpush.bf16.msra.mxu0 %v1348
        %1777 = vmatmul.bf16.gmra.mxu0 %v761
        %v1778 = vpop.f32.mrf.mxu0
        %v1779 = vadd.f32 %v1730, %v1778
        %v1780 = vpop.f32.mrf.mxu0
        %v1781 = vadd.f32 %v1732, %v1780
        %1782 = vmatmul.bf16.gmra.mxu0 %v769
        %v1783 = vpop.f32.mrf.mxu0
        %v1784 = vadd.f32 %v1735, %v1783
        %v1785 = vpop.f32.mrf.mxu0
        %v1786 = vadd.f32 %v1737, %v1785
        %1787 = vmatmul.bf16.gmra.mxu0 %v777
        %v1788 = vpop.f32.mrf.mxu0
        %v1789 = vadd.f32 %v1740, %v1788
        %v1790 = vpop.f32.mrf.mxu0
        %v1791 = vadd.f32 %v1742, %v1790
        %1792 = vmatmul.bf16.gmra.mxu0 %v785
        %v1793 = vpop.f32.mrf.mxu0
        %v1794 = vadd.f32 %v1745, %v1793
        %v1795 = vpop.f32.mrf.mxu0
        %v1796 = vadd.f32 %v1747, %v1795
        %1797 = vmatmul.bf16.gmra.mxu0 %v793
        %v1798 = vpop.f32.mrf.mxu0
        %v1799 = vadd.f32 %v1750, %v1798
        %v1800 = vpop.f32.mrf.mxu0
        %v1801 = vadd.f32 %v1752, %v1800
        %1802 = vmatmul.bf16.gmra.mxu0 %v801
        %v1803 = vpop.f32.mrf.mxu0
        %v1804 = vadd.f32 %v1755, %v1803
        %v1805 = vpop.f32.mrf.mxu0
        %v1806 = vadd.f32 %v1757, %v1805
        %1807 = vmatmul.bf16.gmra.mxu0 %v809
        %v1808 = vpop.f32.mrf.mxu0
        %v1809 = vadd.f32 %v1760, %v1808
        %v1810 = vpop.f32.mrf.mxu0
        %v1811 = vadd.f32 %v1762, %v1810
        %1812 = vmatmul.bf16.gmra.mxu0 %v817
        %v1813 = vpop.f32.mrf.mxu0
        %v1814 = vadd.f32 %v1765, %v1813
        %v1815 = vpop.f32.mrf.mxu0
        %v1816 = vadd.f32 %v1767, %v1815
        %1817 = vdwg.mxu0
        %1818 = vmatpush.bf16.msra.mxu0 %v1378
        %1819 = vmatpush.bf16.msra.mxu0 %v1376
        %1820 = vmatpush.bf16.msra.mxu0 %v1374
        %1821 = vmatpush.bf16.msra.mxu0 %v1372
        %1822 = vmatpush.bf16.msra.mxu0 %v1370
        %1823 = vmatpush.bf16.msra.mxu0 %v1368
        %1824 = vmatpush.bf16.msra.mxu0 %v1366
        %1825 = vmatpush.bf16.msra.mxu0 %v1364
        %1826 = vmatmul.bf16.gmra.mxu0 %v762
        %v1827 = vpop.f32.mrf.mxu0
        %v1828 = vadd.f32 %v1779, %v1827
        %v1829 = vpop.f32.mrf.mxu0
        %v1830 = vadd.f32 %v1781, %v1829
        %1831 = vmatmul.bf16.gmra.mxu0 %v770
        %v1832 = vpop.f32.mrf.mxu0
        %v1833 = vadd.f32 %v1784, %v1832
        %v1834 = vpop.f32.mrf.mxu0
        %v1835 = vadd.f32 %v1786, %v1834
        %1836 = vmatmul.bf16.gmra.mxu0 %v778
        %v1837 = vpop.f32.mrf.mxu0
        %v1838 = vadd.f32 %v1789, %v1837
        %v1839 = vpop.f32.mrf.mxu0
        %v1840 = vadd.f32 %v1791, %v1839
        %1841 = vmatmul.bf16.gmra.mxu0 %v786
        %v1842 = vpop.f32.mrf.mxu0
        %v1843 = vadd.f32 %v1794, %v1842
        %v1844 = vpop.f32.mrf.mxu0
        %v1845 = vadd.f32 %v1796, %v1844
        %1846 = vmatmul.bf16.gmra.mxu0 %v794
        %v1847 = vpop.f32.mrf.mxu0
        %v1848 = vadd.f32 %v1799, %v1847
        %v1849 = vpop.f32.mrf.mxu0
        %v1850 = vadd.f32 %v1801, %v1849
        %1851 = vmatmul.bf16.gmra.mxu0 %v802
        %v1852 = vpop.f32.mrf.mxu0
        %v1853 = vadd.f32 %v1804, %v1852
        %v1854 = vpop.f32.mrf.mxu0
        %v1855 = vadd.f32 %v1806, %v1854
        %1856 = vmatmul.bf16.gmra.mxu0 %v810
        %v1857 = vpop.f32.mrf.mxu0
        %v1858 = vadd.f32 %v1809, %v1857
        %v1859 = vpop.f32.mrf.mxu0
        %v1860 = vadd.f32 %v1811, %v1859
        %1861 = vmatmul.bf16.gmra.mxu0 %v818
        %v1862 = vpop.f32.mrf.mxu0
        %v1863 = vadd.f32 %v1814, %v1862
        %v1864 = vpop.f32.mrf.mxu0
        %v1865 = vadd.f32 %v1816, %v1864
        %1866 = vdwg.mxu0
        %1867 = vmatpush.bf16.msra.mxu0 %v1394
        %1868 = vmatpush.bf16.msra.mxu0 %v1392
        %1869 = vmatpush.bf16.msra.mxu0 %v1390
        %1870 = vmatpush.bf16.msra.mxu0 %v1388
        %1871 = vmatpush.bf16.msra.mxu0 %v1386
        %1872 = vmatpush.bf16.msra.mxu0 %v1384
        %1873 = vmatpush.bf16.msra.mxu0 %v1382
        %1874 = vmatpush.bf16.msra.mxu0 %v1380
        %1875 = vmatmul.bf16.gmra.mxu0 %v763
        %v1876 = vpop.f32.mrf.mxu0
        %v1877 = vadd.f32 %v1828, %v1876
        %v1878 = vpop.f32.mrf.mxu0
        %v1879 = vadd.f32 %v1830, %v1878
        %1880 = vmatmul.bf16.gmra.mxu0 %v771
        %v1881 = vpop.f32.mrf.mxu0
        %v1882 = vadd.f32 %v1833, %v1881
        %v1883 = vpop.f32.mrf.mxu0
        %v1884 = vadd.f32 %v1835, %v1883
        %1885 = vmatmul.bf16.gmra.mxu0 %v779
        %v1886 = vpop.f32.mrf.mxu0
        %v1887 = vadd.f32 %v1838, %v1886
        %v1888 = vpop.f32.mrf.mxu0
        %v1889 = vadd.f32 %v1840, %v1888
        %1890 = vmatmul.bf16.gmra.mxu0 %v787
        %v1891 = vpop.f32.mrf.mxu0
        %v1892 = vadd.f32 %v1843, %v1891
        %v1893 = vpop.f32.mrf.mxu0
        %v1894 = vadd.f32 %v1845, %v1893
        %1895 = vmatmul.bf16.gmra.mxu0 %v795
        %v1896 = vpop.f32.mrf.mxu0
        %v1897 = vadd.f32 %v1848, %v1896
        %v1898 = vpop.f32.mrf.mxu0
        %v1899 = vadd.f32 %v1850, %v1898
        %1900 = vmatmul.bf16.gmra.mxu0 %v803
        %v1901 = vpop.f32.mrf.mxu0
        %v1902 = vadd.f32 %v1853, %v1901
        %v1903 = vpop.f32.mrf.mxu0
        %v1904 = vadd.f32 %v1855, %v1903
        %1905 = vmatmul.bf16.gmra.mxu0 %v811
        %v1906 = vpop.f32.mrf.mxu0
        %v1907 = vadd.f32 %v1858, %v1906
        %v1908 = vpop.f32.mrf.mxu0
        %v1909 = vadd.f32 %v1860, %v1908
        %1910 = vmatmul.bf16.gmra.mxu0 %v819
        %v1911 = vpop.f32.mrf.mxu0
        %v1912 = vadd.f32 %v1863, %v1911
        %v1913 = vpop.f32.mrf.mxu0
        %v1914 = vadd.f32 %v1865, %v1913
        %1915 = vdwg.mxu0
        %1916 = vmatpush.bf16.msra.mxu0 %v1283
        %1917 = vmatpush.bf16.msra.mxu0 %v1281
        %1918 = vmatpush.bf16.msra.mxu0 %v1279
        %1919 = vmatpush.bf16.msra.mxu0 %v1277
        %1920 = vmatpush.bf16.msra.mxu0 %v1275
        %1921 = vmatpush.bf16.msra.mxu0 %v1273
        %1922 = vmatpush.bf16.msra.mxu0 %v1271
        %1923 = vmatpush.bf16.msra.mxu0 %v1269
        %1924 = vmatmul.bf16.gmra.mxu0 %v756
        %v1925 = vpop.f32.mrf.mxu0
        %v1926 = vadd.f32 %v561, %v1925
        %v1927 = vpop.f32.mrf.mxu0
        %v1928 = vadd.f32 %v561, %v1927
        %1929 = vmatmul.bf16.gmra.mxu0 %v764
        %v1930 = vpop.f32.mrf.mxu0
        %v1931 = vadd.f32 %v561, %v1930
        %v1932 = vpop.f32.mrf.mxu0
        %v1933 = vadd.f32 %v561, %v1932
        %1934 = vmatmul.bf16.gmra.mxu0 %v772
        %v1935 = vpop.f32.mrf.mxu0
        %v1936 = vadd.f32 %v561, %v1935
        %v1937 = vpop.f32.mrf.mxu0
        %v1938 = vadd.f32 %v561, %v1937
        %1939 = vmatmul.bf16.gmra.mxu0 %v780
        %v1940 = vpop.f32.mrf.mxu0
        %v1941 = vadd.f32 %v561, %v1940
        %v1942 = vpop.f32.mrf.mxu0
        %v1943 = vadd.f32 %v561, %v1942
        %1944 = vmatmul.bf16.gmra.mxu0 %v788
        %v1945 = vpop.f32.mrf.mxu0
        %v1946 = vadd.f32 %v561, %v1945
        %v1947 = vpop.f32.mrf.mxu0
        %v1948 = vadd.f32 %v561, %v1947
        %1949 = vmatmul.bf16.gmra.mxu0 %v796
        %v1950 = vpop.f32.mrf.mxu0
        %v1951 = vadd.f32 %v561, %v1950
        %v1952 = vpop.f32.mrf.mxu0
        %v1953 = vadd.f32 %v561, %v1952
        %1954 = vmatmul.bf16.gmra.mxu0 %v804
        %v1955 = vpop.f32.mrf.mxu0
        %v1956 = vadd.f32 %v561, %v1955
        %v1957 = vpop.f32.mrf.mxu0
        %v1958 = vadd.f32 %v561, %v1957
        %1959 = vmatmul.bf16.gmra.mxu0 %v812
        %v1960 = vpop.f32.mrf.mxu0
        %v1961 = vadd.f32 %v561, %v1960
        %v1962 = vpop.f32.mrf.mxu0
        %v1963 = vadd.f32 %v561, %v1962
        %1964 = vdwg.mxu0
        %1965 = vmatpush.bf16.msra.mxu0 %v1299
        %1966 = vmatpush.bf16.msra.mxu0 %v1297
        %1967 = vmatpush.bf16.msra.mxu0 %v1295
        %1968 = vmatpush.bf16.msra.mxu0 %v1293
        %1969 = vmatpush.bf16.msra.mxu0 %v1291
        %1970 = vmatpush.bf16.msra.mxu0 %v1289
        %1971 = vmatpush.bf16.msra.mxu0 %v1287
        %1972 = vmatpush.bf16.msra.mxu0 %v1285
        %1973 = vmatmul.bf16.gmra.mxu0 %v757
        %v1974 = vpop.f32.mrf.mxu0
        %v1975 = vadd.f32 %v1926, %v1974
        %v1976 = vpop.f32.mrf.mxu0
        %v1977 = vadd.f32 %v1928, %v1976
        %1978 = vmatmul.bf16.gmra.mxu0 %v765
        %v1979 = vpop.f32.mrf.mxu0
        %v1980 = vadd.f32 %v1931, %v1979
        %v1981 = vpop.f32.mrf.mxu0
        %v1982 = vadd.f32 %v1933, %v1981
        %1983 = vmatmul.bf16.gmra.mxu0 %v773
        %v1984 = vpop.f32.mrf.mxu0
        %v1985 = vadd.f32 %v1936, %v1984
        %v1986 = vpop.f32.mrf.mxu0
        %v1987 = vadd.f32 %v1938, %v1986
        %1988 = vmatmul.bf16.gmra.mxu0 %v781
        %v1989 = vpop.f32.mrf.mxu0
        %v1990 = vadd.f32 %v1941, %v1989
        %v1991 = vpop.f32.mrf.mxu0
        %v1992 = vadd.f32 %v1943, %v1991
        %1993 = vmatmul.bf16.gmra.mxu0 %v789
        %v1994 = vpop.f32.mrf.mxu0
        %v1995 = vadd.f32 %v1946, %v1994
        %v1996 = vpop.f32.mrf.mxu0
        %v1997 = vadd.f32 %v1948, %v1996
        %1998 = vmatmul.bf16.gmra.mxu0 %v797
        %v1999 = vpop.f32.mrf.mxu0
        %v2000 = vadd.f32 %v1951, %v1999
        %v2001 = vpop.f32.mrf.mxu0
        %v2002 = vadd.f32 %v1953, %v2001
        %2003 = vmatmul.bf16.gmra.mxu0 %v805
        %v2004 = vpop.f32.mrf.mxu0
        %v2005 = vadd.f32 %v1956, %v2004
        %v2006 = vpop.f32.mrf.mxu0
        %v2007 = vadd.f32 %v1958, %v2006
        %2008 = vmatmul.bf16.gmra.mxu0 %v813
        %v2009 = vpop.f32.mrf.mxu0
        %v2010 = vadd.f32 %v1961, %v2009
        %v2011 = vpop.f32.mrf.mxu0
        %v2012 = vadd.f32 %v1963, %v2011
        %2013 = vdwg.mxu0
        %2014 = vmatpush.bf16.msra.mxu0 %v1315
        %2015 = vmatpush.bf16.msra.mxu0 %v1313
        %2016 = vmatpush.bf16.msra.mxu0 %v1311
        %2017 = vmatpush.bf16.msra.mxu0 %v1309
        %2018 = vmatpush.bf16.msra.mxu0 %v1307
        %2019 = vmatpush.bf16.msra.mxu0 %v1305
        %2020 = vmatpush.bf16.msra.mxu0 %v1303
        %2021 = vmatpush.bf16.msra.mxu0 %v1301
        %2022 = vmatmul.bf16.gmra.mxu0 %v758
        %v2023 = vpop.f32.mrf.mxu0
        %v2024 = vadd.f32 %v1975, %v2023
        %v2025 = vpop.f32.mrf.mxu0
        %v2026 = vadd.f32 %v1977, %v2025
        %2027 = vmatmul.bf16.gmra.mxu0 %v766
        %v2028 = vpop.f32.mrf.mxu0
        %v2029 = vadd.f32 %v1980, %v2028
        %v2030 = vpop.f32.mrf.mxu0
        %v2031 = vadd.f32 %v1982, %v2030
        %2032 = vmatmul.bf16.gmra.mxu0 %v774
        %v2033 = vpop.f32.mrf.mxu0
        %v2034 = vadd.f32 %v1985, %v2033
        %v2035 = vpop.f32.mrf.mxu0
        %v2036 = vadd.f32 %v1987, %v2035
        %2037 = vmatmul.bf16.gmra.mxu0 %v782
        %v2038 = vpop.f32.mrf.mxu0
        %v2039 = vadd.f32 %v1990, %v2038
        %v2040 = vpop.f32.mrf.mxu0
        %v2041 = vadd.f32 %v1992, %v2040
        %2042 = vmatmul.bf16.gmra.mxu0 %v790
        %v2043 = vpop.f32.mrf.mxu0
        %v2044 = vadd.f32 %v1995, %v2043
        %v2045 = vpop.f32.mrf.mxu0
        %v2046 = vadd.f32 %v1997, %v2045
        %2047 = vmatmul.bf16.gmra.mxu0 %v798
        %v2048 = vpop.f32.mrf.mxu0
        %v2049 = vadd.f32 %v2000, %v2048
        %v2050 = vpop.f32.mrf.mxu0
        %v2051 = vadd.f32 %v2002, %v2050
        %2052 = vmatmul.bf16.gmra.mxu0 %v806
        %v2053 = vpop.f32.mrf.mxu0
        %v2054 = vadd.f32 %v2005, %v2053
        %v2055 = vpop.f32.mrf.mxu0
        %v2056 = vadd.f32 %v2007, %v2055
        %2057 = vmatmul.bf16.gmra.mxu0 %v814
        %v2058 = vpop.f32.mrf.mxu0
        %v2059 = vadd.f32 %v2010, %v2058
        %v2060 = vpop.f32.mrf.mxu0
        %v2061 = vadd.f32 %v2012, %v2060
        %2062 = vdwg.mxu0
        %2063 = vmatpush.bf16.msra.mxu0 %v1331
        %2064 = vmatpush.bf16.msra.mxu0 %v1329
        %2065 = vmatpush.bf16.msra.mxu0 %v1327
        %2066 = vmatpush.bf16.msra.mxu0 %v1325
        %2067 = vmatpush.bf16.msra.mxu0 %v1323
        %2068 = vmatpush.bf16.msra.mxu0 %v1321
        %2069 = vmatpush.bf16.msra.mxu0 %v1319
        %2070 = vmatpush.bf16.msra.mxu0 %v1317
        %2071 = vmatmul.bf16.gmra.mxu0 %v759
        %v2072 = vpop.f32.mrf.mxu0
        %v2073 = vadd.f32 %v2024, %v2072
        %v2074 = vpop.f32.mrf.mxu0
        %v2075 = vadd.f32 %v2026, %v2074
        %2076 = vmatmul.bf16.gmra.mxu0 %v767
        %v2077 = vpop.f32.mrf.mxu0
        %v2078 = vadd.f32 %v2029, %v2077
        %v2079 = vpop.f32.mrf.mxu0
        %v2080 = vadd.f32 %v2031, %v2079
        %2081 = vmatmul.bf16.gmra.mxu0 %v775
        %v2082 = vpop.f32.mrf.mxu0
        %v2083 = vadd.f32 %v2034, %v2082
        %v2084 = vpop.f32.mrf.mxu0
        %v2085 = vadd.f32 %v2036, %v2084
        %2086 = vmatmul.bf16.gmra.mxu0 %v783
        %v2087 = vpop.f32.mrf.mxu0
        %v2088 = vadd.f32 %v2039, %v2087
        %v2089 = vpop.f32.mrf.mxu0
        %v2090 = vadd.f32 %v2041, %v2089
        %2091 = vmatmul.bf16.gmra.mxu0 %v791
        %v2092 = vpop.f32.mrf.mxu0
        %v2093 = vadd.f32 %v2044, %v2092
        %v2094 = vpop.f32.mrf.mxu0
        %v2095 = vadd.f32 %v2046, %v2094
        %2096 = vmatmul.bf16.gmra.mxu0 %v799
        %v2097 = vpop.f32.mrf.mxu0
        %v2098 = vadd.f32 %v2049, %v2097
        %v2099 = vpop.f32.mrf.mxu0
        %v2100 = vadd.f32 %v2051, %v2099
        %2101 = vmatmul.bf16.gmra.mxu0 %v807
        %v2102 = vpop.f32.mrf.mxu0
        %v2103 = vadd.f32 %v2054, %v2102
        %v2104 = vpop.f32.mrf.mxu0
        %v2105 = vadd.f32 %v2056, %v2104
        %2106 = vmatmul.bf16.gmra.mxu0 %v815
        %v2107 = vpop.f32.mrf.mxu0
        %v2108 = vadd.f32 %v2059, %v2107
        %v2109 = vpop.f32.mrf.mxu0
        %v2110 = vadd.f32 %v2061, %v2109
        %2111 = vdwg.mxu0
        %2112 = vmatpush.bf16.msra.mxu0 %v1347
        %2113 = vmatpush.bf16.msra.mxu0 %v1345
        %2114 = vmatpush.bf16.msra.mxu0 %v1343
        %2115 = vmatpush.bf16.msra.mxu0 %v1341
        %2116 = vmatpush.bf16.msra.mxu0 %v1339
        %2117 = vmatpush.bf16.msra.mxu0 %v1337
        %2118 = vmatpush.bf16.msra.mxu0 %v1335
        %2119 = vmatpush.bf16.msra.mxu0 %v1333
        %2120 = vmatmul.bf16.gmra.mxu0 %v760
        %v2121 = vpop.f32.mrf.mxu0
        %v2122 = vadd.f32 %v2073, %v2121
        %v2123 = vpop.f32.mrf.mxu0
        %v2124 = vadd.f32 %v2075, %v2123
        %2125 = vmatmul.bf16.gmra.mxu0 %v768
        %v2126 = vpop.f32.mrf.mxu0
        %v2127 = vadd.f32 %v2078, %v2126
        %v2128 = vpop.f32.mrf.mxu0
        %v2129 = vadd.f32 %v2080, %v2128
        %2130 = vmatmul.bf16.gmra.mxu0 %v776
        %v2131 = vpop.f32.mrf.mxu0
        %v2132 = vadd.f32 %v2083, %v2131
        %v2133 = vpop.f32.mrf.mxu0
        %v2134 = vadd.f32 %v2085, %v2133
        %2135 = vmatmul.bf16.gmra.mxu0 %v784
        %v2136 = vpop.f32.mrf.mxu0
        %v2137 = vadd.f32 %v2088, %v2136
        %v2138 = vpop.f32.mrf.mxu0
        %v2139 = vadd.f32 %v2090, %v2138
        %2140 = vmatmul.bf16.gmra.mxu0 %v792
        %v2141 = vpop.f32.mrf.mxu0
        %v2142 = vadd.f32 %v2093, %v2141
        %v2143 = vpop.f32.mrf.mxu0
        %v2144 = vadd.f32 %v2095, %v2143
        %2145 = vmatmul.bf16.gmra.mxu0 %v800
        %v2146 = vpop.f32.mrf.mxu0
        %v2147 = vadd.f32 %v2098, %v2146
        %v2148 = vpop.f32.mrf.mxu0
        %v2149 = vadd.f32 %v2100, %v2148
        %2150 = vmatmul.bf16.gmra.mxu0 %v808
        %v2151 = vpop.f32.mrf.mxu0
        %v2152 = vadd.f32 %v2103, %v2151
        %v2153 = vpop.f32.mrf.mxu0
        %v2154 = vadd.f32 %v2105, %v2153
        %2155 = vmatmul.bf16.gmra.mxu0 %v816
        %v2156 = vpop.f32.mrf.mxu0
        %v2157 = vadd.f32 %v2108, %v2156
        %v2158 = vpop.f32.mrf.mxu0
        %v2159 = vadd.f32 %v2110, %v2158
        %2160 = vdwg.mxu0
        %2161 = vmatpush.bf16.msra.mxu0 %v1363
        %2162 = vmatpush.bf16.msra.mxu0 %v1361
        %2163 = vmatpush.bf16.msra.mxu0 %v1359
        %2164 = vmatpush.bf16.msra.mxu0 %v1357
        %2165 = vmatpush.bf16.msra.mxu0 %v1355
        %2166 = vmatpush.bf16.msra.mxu0 %v1353
        %2167 = vmatpush.bf16.msra.mxu0 %v1351
        %2168 = vmatpush.bf16.msra.mxu0 %v1349
        %2169 = vmatmul.bf16.gmra.mxu0 %v761
        %v2170 = vpop.f32.mrf.mxu0
        %v2171 = vadd.f32 %v2122, %v2170
        %v2172 = vpop.f32.mrf.mxu0
        %v2173 = vadd.f32 %v2124, %v2172
        %2174 = vmatmul.bf16.gmra.mxu0 %v769
        %v2175 = vpop.f32.mrf.mxu0
        %v2176 = vadd.f32 %v2127, %v2175
        %v2177 = vpop.f32.mrf.mxu0
        %v2178 = vadd.f32 %v2129, %v2177
        %2179 = vmatmul.bf16.gmra.mxu0 %v777
        %v2180 = vpop.f32.mrf.mxu0
        %v2181 = vadd.f32 %v2132, %v2180
        %v2182 = vpop.f32.mrf.mxu0
        %v2183 = vadd.f32 %v2134, %v2182
        %2184 = vmatmul.bf16.gmra.mxu0 %v785
        %v2185 = vpop.f32.mrf.mxu0
        %v2186 = vadd.f32 %v2137, %v2185
        %v2187 = vpop.f32.mrf.mxu0
        %v2188 = vadd.f32 %v2139, %v2187
        %2189 = vmatmul.bf16.gmra.mxu0 %v793
        %v2190 = vpop.f32.mrf.mxu0
        %v2191 = vadd.f32 %v2142, %v2190
        %v2192 = vpop.f32.mrf.mxu0
        %v2193 = vadd.f32 %v2144, %v2192
        %2194 = vmatmul.bf16.gmra.mxu0 %v801
        %v2195 = vpop.f32.mrf.mxu0
        %v2196 = vadd.f32 %v2147, %v2195
        %v2197 = vpop.f32.mrf.mxu0
        %v2198 = vadd.f32 %v2149, %v2197
        %2199 = vmatmul.bf16.gmra.mxu0 %v809
        %v2200 = vpop.f32.mrf.mxu0
        %v2201 = vadd.f32 %v2152, %v2200
        %v2202 = vpop.f32.mrf.mxu0
        %v2203 = vadd.f32 %v2154, %v2202
        %2204 = vmatmul.bf16.gmra.mxu0 %v817
        %v2205 = vpop.f32.mrf.mxu0
        %v2206 = vadd.f32 %v2157, %v2205
        %v2207 = vpop.f32.mrf.mxu0
        %v2208 = vadd.f32 %v2159, %v2207
        %2209 = vdwg.mxu0
        %2210 = vmatpush.bf16.msra.mxu0 %v1379
        %2211 = vmatpush.bf16.msra.mxu0 %v1377
        %2212 = vmatpush.bf16.msra.mxu0 %v1375
        %2213 = vmatpush.bf16.msra.mxu0 %v1373
        %2214 = vmatpush.bf16.msra.mxu0 %v1371
        %2215 = vmatpush.bf16.msra.mxu0 %v1369
        %2216 = vmatpush.bf16.msra.mxu0 %v1367
        %2217 = vmatpush.bf16.msra.mxu0 %v1365
        %2218 = vmatmul.bf16.gmra.mxu0 %v762
        %v2219 = vpop.f32.mrf.mxu0
        %v2220 = vadd.f32 %v2171, %v2219
        %v2221 = vpop.f32.mrf.mxu0
        %v2222 = vadd.f32 %v2173, %v2221
        %2223 = vmatmul.bf16.gmra.mxu0 %v770
        %v2224 = vpop.f32.mrf.mxu0
        %v2225 = vadd.f32 %v2176, %v2224
        %v2226 = vpop.f32.mrf.mxu0
        %v2227 = vadd.f32 %v2178, %v2226
        %2228 = vmatmul.bf16.gmra.mxu0 %v778
        %v2229 = vpop.f32.mrf.mxu0
        %v2230 = vadd.f32 %v2181, %v2229
        %v2231 = vpop.f32.mrf.mxu0
        %v2232 = vadd.f32 %v2183, %v2231
        %2233 = vmatmul.bf16.gmra.mxu0 %v786
        %v2234 = vpop.f32.mrf.mxu0
        %v2235 = vadd.f32 %v2186, %v2234
        %v2236 = vpop.f32.mrf.mxu0
        %v2237 = vadd.f32 %v2188, %v2236
        %2238 = vmatmul.bf16.gmra.mxu0 %v794
        %v2239 = vpop.f32.mrf.mxu0
        %v2240 = vadd.f32 %v2191, %v2239
        %v2241 = vpop.f32.mrf.mxu0
        %v2242 = vadd.f32 %v2193, %v2241
        %2243 = vmatmul.bf16.gmra.mxu0 %v802
        %v2244 = vpop.f32.mrf.mxu0
        %v2245 = vadd.f32 %v2196, %v2244
        %v2246 = vpop.f32.mrf.mxu0
        %v2247 = vadd.f32 %v2198, %v2246
        %2248 = vmatmul.bf16.gmra.mxu0 %v810
        %v2249 = vpop.f32.mrf.mxu0
        %v2250 = vadd.f32 %v2201, %v2249
        %v2251 = vpop.f32.mrf.mxu0
        %v2252 = vadd.f32 %v2203, %v2251
        %2253 = vmatmul.bf16.gmra.mxu0 %v818
        %v2254 = vpop.f32.mrf.mxu0
        %v2255 = vadd.f32 %v2206, %v2254
        %v2256 = vpop.f32.mrf.mxu0
        %v2257 = vadd.f32 %v2208, %v2256
        %2258 = vdwg.mxu0
        %2259 = vmatpush.bf16.msra.mxu0 %v1395
        %2260 = vmatpush.bf16.msra.mxu0 %v1393
        %2261 = vmatpush.bf16.msra.mxu0 %v1391
        %2262 = vmatpush.bf16.msra.mxu0 %v1389
        %2263 = vmatpush.bf16.msra.mxu0 %v1387
        %2264 = vmatpush.bf16.msra.mxu0 %v1385
        %2265 = vmatpush.bf16.msra.mxu0 %v1383
        %2266 = vmatpush.bf16.msra.mxu0 %v1381
        %2267 = vmatmul.bf16.gmra.mxu0 %v763
        %v2268 = vpop.f32.mrf.mxu0
        %v2269 = vadd.f32 %v2220, %v2268
        %v2270 = vpop.f32.mrf.mxu0
        %v2271 = vadd.f32 %v2222, %v2270
        %2272 = vmatmul.bf16.gmra.mxu0 %v771
        %v2273 = vpop.f32.mrf.mxu0
        %v2274 = vadd.f32 %v2225, %v2273
        %v2275 = vpop.f32.mrf.mxu0
        %v2276 = vadd.f32 %v2227, %v2275
        %2277 = vmatmul.bf16.gmra.mxu0 %v779
        %v2278 = vpop.f32.mrf.mxu0
        %v2279 = vadd.f32 %v2230, %v2278
        %v2280 = vpop.f32.mrf.mxu0
        %v2281 = vadd.f32 %v2232, %v2280
        %2282 = vmatmul.bf16.gmra.mxu0 %v787
        %v2283 = vpop.f32.mrf.mxu0
        %v2284 = vadd.f32 %v2235, %v2283
        %v2285 = vpop.f32.mrf.mxu0
        %v2286 = vadd.f32 %v2237, %v2285
        %2287 = vmatmul.bf16.gmra.mxu0 %v795
        %v2288 = vpop.f32.mrf.mxu0
        %v2289 = vadd.f32 %v2240, %v2288
        %v2290 = vpop.f32.mrf.mxu0
        %v2291 = vadd.f32 %v2242, %v2290
        %2292 = vmatmul.bf16.gmra.mxu0 %v803
        %v2293 = vpop.f32.mrf.mxu0
        %v2294 = vadd.f32 %v2245, %v2293
        %v2295 = vpop.f32.mrf.mxu0
        %v2296 = vadd.f32 %v2247, %v2295
        %2297 = vmatmul.bf16.gmra.mxu0 %v811
        %v2298 = vpop.f32.mrf.mxu0
        %v2299 = vadd.f32 %v2250, %v2298
        %v2300 = vpop.f32.mrf.mxu0
        %v2301 = vadd.f32 %v2252, %v2300
        %2302 = vmatmul.bf16.gmra.mxu0 %v819
        %v2303 = vpop.f32.mrf.mxu0
        %v2304 = vadd.f32 %v2255, %v2303
        %v2305 = vpop.f32.mrf.mxu0
        %v2306 = vadd.f32 %v2257, %v2305
        %2307 = vdwg.mxu0
        %v2308 = vmul.f32 %v1877, 0.01
        %v2309 = vmul.f32 %v2269, 0.01
        %v2310 = vmul.f32 %v1879, 0.01
        %v2311 = vmul.f32 %v2271, 0.01
        %v2312 = vmul.f32 %v1882, 0.01
        %v2313 = vmul.f32 %v2274, 0.01
        %v2314 = vmul.f32 %v1884, 0.01
        %v2315 = vmul.f32 %v2276, 0.01
        %v2316 = vmul.f32 %v1887, 0.01
        %v2317 = vmul.f32 %v2279, 0.01
        %v2318 = vmul.f32 %v1889, 0.01
        %v2319 = vmul.f32 %v2281, 0.01
        %v2320 = vmul.f32 %v1892, 0.01
        %v2321 = vmul.f32 %v2284, 0.01
        %v2322 = vmul.f32 %v1894, 0.01
        %v2323 = vmul.f32 %v2286, 0.01
        %v2324 = vmul.f32 %v1897, 0.01
        %v2325 = vmul.f32 %v2289, 0.01
        %v2326 = vmul.f32 %v1899, 0.01
        %v2327 = vmul.f32 %v2291, 0.01
        %v2328 = vmul.f32 %v1902, 0.01
        %v2329 = vmul.f32 %v2294, 0.01
        %v2330 = vmul.f32 %v1904, 0.01
        %v2331 = vmul.f32 %v2296, 0.01
        %v2332 = vmul.f32 %v1907, 0.01
        %v2333 = vmul.f32 %v2299, 0.01
        %v2334 = vmul.f32 %v1909, 0.01
        %v2335 = vmul.f32 %v2301, 0.01
        %v2336 = vmul.f32 %v1912, 0.01
        %v2337 = vmul.f32 %v2304, 0.01
        %v2338 = vmul.f32 %v1914, 0.01
        %v2339 = vmul.f32 %v2306, 0.01
        %v2340 = vmax.f32 %v1877, %v2308
        %v2341 = vmax.f32 %v2269, %v2309
        %v2342 = vmax.f32 %v1879, %v2310
        %v2343 = vmax.f32 %v2271, %v2311
        %v2344 = vmax.f32 %v1882, %v2312
        %v2345 = vmax.f32 %v2274, %v2313
        %v2346 = vmax.f32 %v1884, %v2314
        %v2347 = vmax.f32 %v2276, %v2315
        %v2348 = vmax.f32 %v1887, %v2316
        %v2349 = vmax.f32 %v2279, %v2317
        %v2350 = vmax.f32 %v1889, %v2318
        %v2351 = vmax.f32 %v2281, %v2319
        %v2352 = vmax.f32 %v1892, %v2320
        %v2353 = vmax.f32 %v2284, %v2321
        %v2354 = vmax.f32 %v1894, %v2322
        %v2355 = vmax.f32 %v2286, %v2323
        %v2356 = vmax.f32 %v1897, %v2324
        %v2357 = vmax.f32 %v2289, %v2325
        %v2358 = vmax.f32 %v1899, %v2326
        %v2359 = vmax.f32 %v2291, %v2327
        %v2360 = vmax.f32 %v1902, %v2328
        %v2361 = vmax.f32 %v2294, %v2329
        %v2362 = vmax.f32 %v1904, %v2330
        %v2363 = vmax.f32 %v2296, %v2331
        %v2364 = vmax.f32 %v1907, %v2332
        %v2365 = vmax.f32 %v2299, %v2333
        %v2366 = vmax.f32 %v1909, %v2334
        %v2367 = vmax.f32 %v2301, %v2335
        %v2368 = vmax.f32 %v1912, %v2336
        %v2369 = vmax.f32 %v2304, %v2337
        %v2370 = vmax.f32 %v1914, %v2338
        %v2371 = vmax.f32 %v2306, %v2339
        %v2372 = vpack.c.bf16 %v2342, %v2340
        %v2373 = vpack.c.bf16 %v2343, %v2341
        %v2374 = vpack.c.bf16 %v2346, %v2344
        %v2375 = vpack.c.bf16 %v2347, %v2345
        %v2376 = vpack.c.bf16 %v2350, %v2348
        %v2377 = vpack.c.bf16 %v2351, %v2349
        %v2378 = vpack.c.bf16 %v2354, %v2352
        %v2379 = vpack.c.bf16 %v2355, %v2353
        %v2380 = vpack.c.bf16 %v2358, %v2356
        %v2381 = vpack.c.bf16 %v2359, %v2357
        %v2382 = vpack.c.bf16 %v2362, %v2360
        %v2383 = vpack.c.bf16 %v2363, %v2361
        %v2384 = vpack.c.bf16 %v2366, %v2364
        %v2385 = vpack.c.bf16 %v2367, %v2365
        %v2386 = vpack.c.bf16 %v2370, %v2368
        %v2387 = vpack.c.bf16 %v2371, %v2369
        %v2388 = vld [vmem:[#allocation8] sm:$0xff]
        %v2389 = vld [vmem:[#allocation8 + $0x8] sm:$0xff]
        %v2390 = vld [vmem:[#allocation8 + $0x10] sm:$0xff]
        %v2391 = vld [vmem:[#allocation8 + $0x18] sm:$0xff]
        %v2392 = vld [vmem:[#allocation8 + $0x20] sm:$0xff]
        %v2393 = vld [vmem:[#allocation8 + $0x28] sm:$0xff]
        %v2394 = vld [vmem:[#allocation8 + $0x30] sm:$0xff]
        %v2395 = vld [vmem:[#allocation8 + $0x38] sm:$0xff]
        %v2396 = vld [vmem:[#allocation8 + $0x40] sm:$0xff]
        %v2397 = vld [vmem:[#allocation8 + $0x48] sm:$0xff]
        %v2398 = vld [vmem:[#allocation8 + $0x50] sm:$0xff]
        %v2399 = vld [vmem:[#allocation8 + $0x58] sm:$0xff]
        %v2400 = vld [vmem:[#allocation8 + $0x60] sm:$0xff]
        %v2401 = vld [vmem:[#allocation8 + $0x68] sm:$0xff]
        %v2402 = vld [vmem:[#allocation8 + $0x70] sm:$0xff]
        %v2403 = vld [vmem:[#allocation8 + $0x78] sm:$0xff]
        %v2404 = vld [vmem:[#allocation8 + $0x80] sm:$0xff]
        %v2405 = vld [vmem:[#allocation8 + $0x88] sm:$0xff]
        %v2406 = vld [vmem:[#allocation8 + $0x90] sm:$0xff]
        %v2407 = vld [vmem:[#allocation8 + $0x98] sm:$0xff]
        %v2408 = vld [vmem:[#allocation8 + $0xa0] sm:$0xff]
        %v2409 = vld [vmem:[#allocation8 + $0xa8] sm:$0xff]
        %v2410 = vld [vmem:[#allocation8 + $0xb0] sm:$0xff]
        %v2411 = vld [vmem:[#allocation8 + $0xb8] sm:$0xff]
        %v2412 = vld [vmem:[#allocation8 + $0xc0] sm:$0xff]
        %v2413 = vld [vmem:[#allocation8 + $0xc8] sm:$0xff]
        %v2414 = vld [vmem:[#allocation8 + $0xd0] sm:$0xff]
        %v2415 = vld [vmem:[#allocation8 + $0xd8] sm:$0xff]
        %v2416 = vld [vmem:[#allocation8 + $0xe0] sm:$0xff]
        %v2417 = vld [vmem:[#allocation8 + $0xe8] sm:$0xff]
        %v2418 = vld [vmem:[#allocation8 + $0xf0] sm:$0xff]
        %v2419 = vld [vmem:[#allocation8 + $0xf8] sm:$0xff]
        %v2420 = vld [vmem:[%s4] sm:$0x3]
        %v2422 = vperm.slane %v2420, 0
        %v2423 = vperm.slane %v2420, 1
        %v2458 = vunpack.c.l.b16 %v2388
        %v2459 = vunpack.c.h.b16 %v2388
        %v2460 = vunpack.c.l.b16 %v2389
        %v2461 = vunpack.c.h.b16 %v2389
        %v2462 = vunpack.c.l.b16 %v2390
        %v2463 = vunpack.c.h.b16 %v2390
        %v2464 = vunpack.c.l.b16 %v2391
        %v2465 = vunpack.c.h.b16 %v2391
        %v2466 = vunpack.c.l.b16 %v2392
        %v2467 = vunpack.c.h.b16 %v2392
        %v2468 = vunpack.c.l.b16 %v2393
        %v2469 = vunpack.c.h.b16 %v2393
        %v2470 = vunpack.c.l.b16 %v2394
        %v2471 = vunpack.c.h.b16 %v2394
        %v2472 = vunpack.c.l.b16 %v2395
        %v2473 = vunpack.c.h.b16 %v2395
        %v2474 = vunpack.c.l.b16 %v2396
        %v2475 = vunpack.c.h.b16 %v2396
        %v2476 = vunpack.c.l.b16 %v2397
        %v2477 = vunpack.c.h.b16 %v2397
        %v2478 = vunpack.c.l.b16 %v2398
        %v2479 = vunpack.c.h.b16 %v2398
        %v2480 = vunpack.c.l.b16 %v2399
        %v2481 = vunpack.c.h.b16 %v2399
        %v2482 = vunpack.c.l.b16 %v2400
        %v2483 = vunpack.c.h.b16 %v2400
        %v2484 = vunpack.c.l.b16 %v2401
        %v2485 = vunpack.c.h.b16 %v2401
        %v2486 = vunpack.c.l.b16 %v2402
        %v2487 = vunpack.c.h.b16 %v2402
        %v2488 = vunpack.c.l.b16 %v2403
        %v2489 = vunpack.c.h.b16 %v2403
        %v2490 = vunpack.c.l.b16 %v2404
        %v2491 = vunpack.c.h.b16 %v2404
        %v2492 = vunpack.c.l.b16 %v2405
        %v2493 = vunpack.c.h.b16 %v2405
        %v2494 = vunpack.c.l.b16 %v2406
        %v2495 = vunpack.c.h.b16 %v2406
        %v2496 = vunpack.c.l.b16 %v2407
        %v2497 = vunpack.c.h.b16 %v2407
        %v2498 = vunpack.c.l.b16 %v2408
        %v2499 = vunpack.c.h.b16 %v2408
        %v2500 = vunpack.c.l.b16 %v2409
        %v2501 = vunpack.c.h.b16 %v2409
        %v2502 = vunpack.c.l.b16 %v2410
        %v2503 = vunpack.c.h.b16 %v2410
        %v2504 = vunpack.c.l.b16 %v2411
        %v2505 = vunpack.c.h.b16 %v2411
        %v2506 = vunpack.c.l.b16 %v2412
        %v2507 = vunpack.c.h.b16 %v2412
        %v2508 = vunpack.c.l.b16 %v2413
        %v2509 = vunpack.c.h.b16 %v2413
        %v2510 = vunpack.c.l.b16 %v2414
        %v2511 = vunpack.c.h.b16 %v2414
        %v2512 = vunpack.c.l.b16 %v2415
        %v2513 = vunpack.c.h.b16 %v2415
        %v2514 = vunpack.c.l.b16 %v2416
        %v2515 = vunpack.c.h.b16 %v2416
        %v2516 = vunpack.c.l.b16 %v2417
        %v2517 = vunpack.c.h.b16 %v2417
        %v2518 = vunpack.c.l.b16 %v2418
        %v2519 = vunpack.c.h.b16 %v2418
        %v2520 = vunpack.c.l.b16 %v2419
        %v2521 = vunpack.c.h.b16 %v2419
        %v2522 = vpack.c.b16 %v2460, %v2458
        %v2523 = vpack.c.b16 %v2461, %v2459
        %v2524 = vpack.c.b16 %v2464, %v2462
        %v2525 = vpack.c.b16 %v2465, %v2463
        %v2526 = vpack.c.b16 %v2468, %v2466
        %v2527 = vpack.c.b16 %v2469, %v2467
        %v2528 = vpack.c.b16 %v2472, %v2470
        %v2529 = vpack.c.b16 %v2473, %v2471
        %v2530 = vpack.c.b16 %v2476, %v2474
        %v2531 = vpack.c.b16 %v2477, %v2475
        %v2532 = vpack.c.b16 %v2480, %v2478
        %v2533 = vpack.c.b16 %v2481, %v2479
        %v2534 = vpack.c.b16 %v2484, %v2482
        %v2535 = vpack.c.b16 %v2485, %v2483
        %v2536 = vpack.c.b16 %v2488, %v2486
        %v2537 = vpack.c.b16 %v2489, %v2487
        %v2538 = vpack.c.b16 %v2492, %v2490
        %v2539 = vpack.c.b16 %v2493, %v2491
        %v2540 = vpack.c.b16 %v2496, %v2494
        %v2541 = vpack.c.b16 %v2497, %v2495
        %v2542 = vpack.c.b16 %v2500, %v2498
        %v2543 = vpack.c.b16 %v2501, %v2499
        %v2544 = vpack.c.b16 %v2504, %v2502
        %v2545 = vpack.c.b16 %v2505, %v2503
        %v2546 = vpack.c.b16 %v2508, %v2506
        %v2547 = vpack.c.b16 %v2509, %v2507
        %v2548 = vpack.c.b16 %v2512, %v2510
        %v2549 = vpack.c.b16 %v2513, %v2511
        %v2550 = vpack.c.b16 %v2516, %v2514
        %v2551 = vpack.c.b16 %v2517, %v2515
        %v2552 = vpack.c.b16 %v2520, %v2518
        %v2553 = vpack.c.b16 %v2521, %v2519
        %2586 = vmatpush.bf16.msra.mxu0 %v2536
        %2587 = vmatpush.bf16.msra.mxu0 %v2534
        %2588 = vmatpush.bf16.msra.mxu0 %v2532
        %2589 = vmatpush.bf16.msra.mxu0 %v2530
        %2590 = vmatpush.bf16.msra.mxu0 %v2528
        %2591 = vmatpush.bf16.msra.mxu0 %v2526
        %2592 = vmatpush.bf16.msra.mxu0 %v2524
        %2593 = vmatpush.bf16.msra.mxu0 %v2522
        %2594 = vmatmul.bf16.gmra.mxu0 %v2372
        %v2595 = vpop.f32.mrf.mxu0
        %v2596 = vadd.f32 %v2422, %v2595
        %v2597 = vpop.f32.mrf.mxu0
        %v2598 = vadd.f32 %v2422, %v2597
        %2599 = vmatmul.bf16.gmra.mxu0 %v2374
        %v2600 = vpop.f32.mrf.mxu0
        %v2601 = vadd.f32 %v2422, %v2600
        %v2602 = vpop.f32.mrf.mxu0
        %v2603 = vadd.f32 %v2422, %v2602
        %2604 = vmatmul.bf16.gmra.mxu0 %v2376
        %v2605 = vpop.f32.mrf.mxu0
        %v2606 = vadd.f32 %v2422, %v2605
        %v2607 = vpop.f32.mrf.mxu0
        %v2608 = vadd.f32 %v2422, %v2607
        %2609 = vmatmul.bf16.gmra.mxu0 %v2378
        %v2610 = vpop.f32.mrf.mxu0
        %v2611 = vadd.f32 %v2422, %v2610
        %v2612 = vpop.f32.mrf.mxu0
        %v2613 = vadd.f32 %v2422, %v2612
        %2614 = vmatmul.bf16.gmra.mxu0 %v2380
        %v2615 = vpop.f32.mrf.mxu0
        %v2616 = vadd.f32 %v2422, %v2615
        %v2617 = vpop.f32.mrf.mxu0
        %v2618 = vadd.f32 %v2422, %v2617
        %2619 = vmatmul.bf16.gmra.mxu0 %v2382
        %v2620 = vpop.f32.mrf.mxu0
        %v2621 = vadd.f32 %v2422, %v2620
        %v2622 = vpop.f32.mrf.mxu0
        %v2623 = vadd.f32 %v2422, %v2622
        %2624 = vmatmul.bf16.gmra.mxu0 %v2384
        %v2625 = vpop.f32.mrf.mxu0
        %v2626 = vadd.f32 %v2422, %v2625
        %v2627 = vpop.f32.mrf.mxu0
        %v2628 = vadd.f32 %v2422, %v2627
        %2629 = vmatmul.bf16.gmra.mxu0 %v2386
        %v2630 = vpop.f32.mrf.mxu0
        %v2631 = vadd.f32 %v2422, %v2630
        %v2632 = vpop.f32.mrf.mxu0
        %v2633 = vadd.f32 %v2422, %v2632
        %2634 = vdwg.mxu0
        %2635 = vmatpush.bf16.msra.mxu0 %v2552
        %2636 = vmatpush.bf16.msra.mxu0 %v2550
        %2637 = vmatpush.bf16.msra.mxu0 %v2548
        %2638 = vmatpush.bf16.msra.mxu0 %v2546
        %2639 = vmatpush.bf16.msra.mxu0 %v2544
        %2640 = vmatpush.bf16.msra.mxu0 %v2542
        %2641 = vmatpush.bf16.msra.mxu0 %v2540
        %2642 = vmatpush.bf16.msra.mxu0 %v2538
        %2643 = vmatmul.bf16.gmra.mxu0 %v2373
        %v2644 = vpop.f32.mrf.mxu0
        %v2645 = vadd.f32 %v2596, %v2644
        %v2646 = vpop.f32.mrf.mxu0
        %v2647 = vadd.f32 %v2598, %v2646
        %2648 = vmatmul.bf16.gmra.mxu0 %v2375
        %v2649 = vpop.f32.mrf.mxu0
        %v2650 = vadd.f32 %v2601, %v2649
        %v2651 = vpop.f32.mrf.mxu0
        %v2652 = vadd.f32 %v2603, %v2651
        %2653 = vmatmul.bf16.gmra.mxu0 %v2377
        %v2654 = vpop.f32.mrf.mxu0
        %v2655 = vadd.f32 %v2606, %v2654
        %v2656 = vpop.f32.mrf.mxu0
        %v2657 = vadd.f32 %v2608, %v2656
        %2658 = vmatmul.bf16.gmra.mxu0 %v2379
        %v2659 = vpop.f32.mrf.mxu0
        %v2660 = vadd.f32 %v2611, %v2659
        %v2661 = vpop.f32.mrf.mxu0
        %v2662 = vadd.f32 %v2613, %v2661
        %2663 = vmatmul.bf16.gmra.mxu0 %v2381
        %v2664 = vpop.f32.mrf.mxu0
        %v2665 = vadd.f32 %v2616, %v2664
        %v2666 = vpop.f32.mrf.mxu0
        %v2667 = vadd.f32 %v2618, %v2666
        %2668 = vmatmul.bf16.gmra.mxu0 %v2383
        %v2669 = vpop.f32.mrf.mxu0
        %v2670 = vadd.f32 %v2621, %v2669
        %v2671 = vpop.f32.mrf.mxu0
        %v2672 = vadd.f32 %v2623, %v2671
        %2673 = vmatmul.bf16.gmra.mxu0 %v2385
        %v2674 = vpop.f32.mrf.mxu0
        %v2675 = vadd.f32 %v2626, %v2674
        %v2676 = vpop.f32.mrf.mxu0
        %v2677 = vadd.f32 %v2628, %v2676
        %2678 = vmatmul.bf16.gmra.mxu0 %v2387
        %v2679 = vpop.f32.mrf.mxu0
        %v2680 = vadd.f32 %v2631, %v2679
        %v2681 = vpop.f32.mrf.mxu0
        %v2682 = vadd.f32 %v2633, %v2681
        %2683 = vdwg.mxu0
        %2684 = vmatpush.bf16.msra.mxu0 %v2537
        %2685 = vmatpush.bf16.msra.mxu0 %v2535
        %2686 = vmatpush.bf16.msra.mxu0 %v2533
        %2687 = vmatpush.bf16.msra.mxu0 %v2531
        %2688 = vmatpush.bf16.msra.mxu0 %v2529
        %2689 = vmatpush.bf16.msra.mxu0 %v2527
        %2690 = vmatpush.bf16.msra.mxu0 %v2525
        %2691 = vmatpush.bf16.msra.mxu0 %v2523
        %2692 = vmatmul.bf16.gmra.mxu0 %v2372
        %v2693 = vpop.f32.mrf.mxu0
        %v2694 = vadd.f32 %v2423, %v2693
        %v2695 = vpop.f32.mrf.mxu0
        %v2696 = vadd.f32 %v2423, %v2695
        %2697 = vmatmul.bf16.gmra.mxu0 %v2374
        %v2698 = vpop.f32.mrf.mxu0
        %v2699 = vadd.f32 %v2423, %v2698
        %v2700 = vpop.f32.mrf.mxu0
        %v2701 = vadd.f32 %v2423, %v2700
        %2702 = vmatmul.bf16.gmra.mxu0 %v2376
        %v2703 = vpop.f32.mrf.mxu0
        %v2704 = vadd.f32 %v2423, %v2703
        %v2705 = vpop.f32.mrf.mxu0
        %v2706 = vadd.f32 %v2423, %v2705
        %2707 = vmatmul.bf16.gmra.mxu0 %v2378
        %v2708 = vpop.f32.mrf.mxu0
        %v2709 = vadd.f32 %v2423, %v2708
        %v2710 = vpop.f32.mrf.mxu0
        %v2711 = vadd.f32 %v2423, %v2710
        %2712 = vmatmul.bf16.gmra.mxu0 %v2380
        %v2713 = vpop.f32.mrf.mxu0
        %v2714 = vadd.f32 %v2423, %v2713
        %v2715 = vpop.f32.mrf.mxu0
        %v2716 = vadd.f32 %v2423, %v2715
        %2717 = vmatmul.bf16.gmra.mxu0 %v2382
        %v2718 = vpop.f32.mrf.mxu0
        %v2719 = vadd.f32 %v2423, %v2718
        %v2720 = vpop.f32.mrf.mxu0
        %v2721 = vadd.f32 %v2423, %v2720
        %2722 = vmatmul.bf16.gmra.mxu0 %v2384
        %v2723 = vpop.f32.mrf.mxu0
        %v2724 = vadd.f32 %v2423, %v2723
        %v2725 = vpop.f32.mrf.mxu0
        %v2726 = vadd.f32 %v2423, %v2725
        %2727 = vmatmul.bf16.gmra.mxu0 %v2386
        %v2728 = vpop.f32.mrf.mxu0
        %v2729 = vadd.f32 %v2423, %v2728
        %v2730 = vpop.f32.mrf.mxu0
        %v2731 = vadd.f32 %v2423, %v2730
        %2732 = vdwg.mxu0
        %2733 = vmatpush.bf16.msra.mxu0 %v2553
        %2734 = vmatpush.bf16.msra.mxu0 %v2551
        %2735 = vmatpush.bf16.msra.mxu0 %v2549
        %2736 = vmatpush.bf16.msra.mxu0 %v2547
        %2737 = vmatpush.bf16.msra.mxu0 %v2545
        %2738 = vmatpush.bf16.msra.mxu0 %v2543
        %2739 = vmatpush.bf16.msra.mxu0 %v2541
        %2740 = vmatpush.bf16.msra.mxu0 %v2539
        %2741 = vmatmul.bf16.gmra.mxu0 %v2373
        %v2742 = vpop.f32.mrf.mxu0
        %v2743 = vadd.f32 %v2694, %v2742
        %v2744 = vpop.f32.mrf.mxu0
        %v2745 = vadd.f32 %v2696, %v2744
        %2746 = vmatmul.bf16.gmra.mxu0 %v2375
        %v2747 = vpop.f32.mrf.mxu0
        %v2748 = vadd.f32 %v2699, %v2747
        %v2749 = vpop.f32.mrf.mxu0
        %v2750 = vadd.f32 %v2701, %v2749
        %2751 = vmatmul.bf16.gmra.mxu0 %v2377
        %v2752 = vpop.f32.mrf.mxu0
        %v2753 = vadd.f32 %v2704, %v2752
        %v2754 = vpop.f32.mrf.mxu0
        %v2755 = vadd.f32 %v2706, %v2754
        %2756 = vmatmul.bf16.gmra.mxu0 %v2379
        %v2757 = vpop.f32.mrf.mxu0
        %v2758 = vadd.f32 %v2709, %v2757
        %v2759 = vpop.f32.mrf.mxu0
        %v2760 = vadd.f32 %v2711, %v2759
        %2761 = vmatmul.bf16.gmra.mxu0 %v2381
        %v2762 = vpop.f32.mrf.mxu0
        %v2763 = vadd.f32 %v2714, %v2762
        %v2764 = vpop.f32.mrf.mxu0
        %v2765 = vadd.f32 %v2716, %v2764
        %2766 = vmatmul.bf16.gmra.mxu0 %v2383
        %v2767 = vpop.f32.mrf.mxu0
        %v2768 = vadd.f32 %v2719, %v2767
        %v2769 = vpop.f32.mrf.mxu0
        %v2770 = vadd.f32 %v2721, %v2769
        %2771 = vmatmul.bf16.gmra.mxu0 %v2385
        %v2772 = vpop.f32.mrf.mxu0
        %v2773 = vadd.f32 %v2724, %v2772
        %v2774 = vpop.f32.mrf.mxu0
        %v2775 = vadd.f32 %v2726, %v2774
        %2776 = vmatmul.bf16.gmra.mxu0 %v2387
        %v2777 = vpop.f32.mrf.mxu0
        %v2778 = vadd.f32 %v2729, %v2777
        %v2779 = vpop.f32.mrf.mxu0
        %v2780 = vadd.f32 %v2731, %v2779
        %2781 = vdwg.mxu0
        %v2782 = vmul.f32 %v2645, 0.01
        %v2783 = vmul.f32 %v2743, 0.01
        %v2784 = vmul.f32 %v2647, 0.01
        %v2785 = vmul.f32 %v2745, 0.01
        %v2786 = vmul.f32 %v2650, 0.01
        %v2787 = vmul.f32 %v2748, 0.01
        %v2788 = vmul.f32 %v2652, 0.01
        %v2789 = vmul.f32 %v2750, 0.01
        %v2790 = vmul.f32 %v2655, 0.01
        %v2791 = vmul.f32 %v2753, 0.01
        %v2792 = vmul.f32 %v2657, 0.01
        %v2793 = vmul.f32 %v2755, 0.01
        %v2794 = vmul.f32 %v2660, 0.01
        %v2795 = vmul.f32 %v2758, 0.01
        %v2796 = vmul.f32 %v2662, 0.01
        %v2797 = vmul.f32 %v2760, 0.01
        %v2798 = vmul.f32 %v2665, 0.01
        %v2799 = vmul.f32 %v2763, 0.01
        %v2800 = vmul.f32 %v2667, 0.01
        %v2801 = vmul.f32 %v2765, 0.01
        %v2802 = vmul.f32 %v2670, 0.01
        %v2803 = vmul.f32 %v2768, 0.01
        %v2804 = vmul.f32 %v2672, 0.01
        %v2805 = vmul.f32 %v2770, 0.01
        %v2806 = vmul.f32 %v2675, 0.01
        %v2807 = vmul.f32 %v2773, 0.01
        %v2808 = vmul.f32 %v2677, 0.01
        %v2809 = vmul.f32 %v2775, 0.01
        %v2810 = vmul.f32 %v2680, 0.01
        %v2811 = vmul.f32 %v2778, 0.01
        %v2812 = vmul.f32 %v2682, 0.01
        %v2813 = vmul.f32 %v2780, 0.01
        %v2814 = vmax.f32 %v2645, %v2782
        %v2815 = vmax.f32 %v2743, %v2783
        %v2816 = vmax.f32 %v2647, %v2784
        %v2817 = vmax.f32 %v2745, %v2785
        %v2818 = vmax.f32 %v2650, %v2786
        %v2819 = vmax.f32 %v2748, %v2787
        %v2820 = vmax.f32 %v2652, %v2788
        %v2821 = vmax.f32 %v2750, %v2789
        %v2822 = vmax.f32 %v2655, %v2790
        %v2823 = vmax.f32 %v2753, %v2791
        %v2824 = vmax.f32 %v2657, %v2792
        %v2825 = vmax.f32 %v2755, %v2793
        %v2826 = vmax.f32 %v2660, %v2794
        %v2827 = vmax.f32 %v2758, %v2795
        %v2828 = vmax.f32 %v2662, %v2796
        %v2829 = vmax.f32 %v2760, %v2797
        %v2830 = vmax.f32 %v2665, %v2798
        %v2831 = vmax.f32 %v2763, %v2799
        %v2832 = vmax.f32 %v2667, %v2800
        %v2833 = vmax.f32 %v2765, %v2801
        %v2834 = vmax.f32 %v2670, %v2802
        %v2835 = vmax.f32 %v2768, %v2803
        %v2836 = vmax.f32 %v2672, %v2804
        %v2837 = vmax.f32 %v2770, %v2805
        %v2838 = vmax.f32 %v2675, %v2806
        %v2839 = vmax.f32 %v2773, %v2807
        %v2840 = vmax.f32 %v2677, %v2808
        %v2841 = vmax.f32 %v2775, %v2809
        %v2842 = vmax.f32 %v2680, %v2810
        %v2843 = vmax.f32 %v2778, %v2811
        %v2844 = vmax.f32 %v2682, %v2812
        %v2845 = vmax.f32 %v2780, %v2813
        %v2846 = vpack.c.bf16 %v2816, %v2814
        %v2847 = vpack.c.bf16 %v2817, %v2815
        %v2848 = vpack.c.bf16 %v2820, %v2818
        %v2849 = vpack.c.bf16 %v2821, %v2819
        %v2850 = vpack.c.bf16 %v2824, %v2822
        %v2851 = vpack.c.bf16 %v2825, %v2823
        %v2852 = vpack.c.bf16 %v2828, %v2826
        %v2853 = vpack.c.bf16 %v2829, %v2827
        %v2854 = vpack.c.bf16 %v2832, %v2830
        %v2855 = vpack.c.bf16 %v2833, %v2831
        %v2856 = vpack.c.bf16 %v2836, %v2834
        %v2857 = vpack.c.bf16 %v2837, %v2835
        %v2858 = vpack.c.bf16 %v2840, %v2838
        %v2859 = vpack.c.bf16 %v2841, %v2839
        %v2860 = vpack.c.bf16 %v2844, %v2842
        %v2861 = vpack.c.bf16 %v2845, %v2843
        %v2862 = vld [vmem:[#allocation10] sm:$0xf]
        %v2863 = vld [vmem:[#allocation10 + $0x4] sm:$0xf]
        %v2864 = vld [vmem:[#allocation10 + $0x8] sm:$0xf]
        %v2865 = vld [vmem:[#allocation10 + $0xc] sm:$0xf]
        %v2866 = vld [vmem:[#allocation10 + $0x10] sm:$0xf]
        %v2867 = vld [vmem:[#allocation10 + $0x14] sm:$0xf]
        %v2868 = vld [vmem:[#allocation10 + $0x18] sm:$0xf]
        %v2869 = vld [vmem:[#allocation10 + $0x1c] sm:$0xf]
        %v2870 = vld [vmem:[#allocation10 + $0x20] sm:$0xf]
        %v2871 = vld [vmem:[#allocation10 + $0x24] sm:$0xf]
        %v2872 = vld [vmem:[#allocation10 + $0x28] sm:$0xf]
        %v2873 = vld [vmem:[#allocation10 + $0x2c] sm:$0xf]
        %v2874 = vld [vmem:[#allocation10 + $0x30] sm:$0xf]
        %v2875 = vld [vmem:[#allocation10 + $0x34] sm:$0xf]
        %v2876 = vld [vmem:[#allocation10 + $0x38] sm:$0xf]
        %v2877 = vld [vmem:[#allocation10 + $0x3c] sm:$0xf]
        %v2878 = vld [vmem:[#allocation10 + $0x40] sm:$0xf]
        %v2879 = vld [vmem:[#allocation10 + $0x44] sm:$0xf]
        %v2880 = vld [vmem:[#allocation10 + $0x48] sm:$0xf]
        %v2881 = vld [vmem:[#allocation10 + $0x4c] sm:$0xf]
        %v2882 = vld [vmem:[#allocation10 + $0x50] sm:$0xf]
        %v2883 = vld [vmem:[#allocation10 + $0x54] sm:$0xf]
        %v2884 = vld [vmem:[#allocation10 + $0x58] sm:$0xf]
        %v2885 = vld [vmem:[#allocation10 + $0x5c] sm:$0xf]
        %v2886 = vld [vmem:[#allocation10 + $0x60] sm:$0xf]
        %v2887 = vld [vmem:[#allocation10 + $0x64] sm:$0xf]
        %v2888 = vld [vmem:[#allocation10 + $0x68] sm:$0xf]
        %v2889 = vld [vmem:[#allocation10 + $0x6c] sm:$0xf]
        %v2890 = vld [vmem:[#allocation10 + $0x70] sm:$0xf]
        %v2891 = vld [vmem:[#allocation10 + $0x74] sm:$0xf]
        %v2892 = vld [vmem:[#allocation10 + $0x78] sm:$0xf]
        %v2893 = vld [vmem:[#allocation10 + $0x7c] sm:$0xf]
        %v2894 = vld [vmem:[%s6] sm:$0x1]
        %v2896 = vperm.slane %v2894, 0
        %v2930 = vunpack.c.l.b16 %v2862
        %v2931 = vunpack.c.l.b16 %v2863
        %v2932 = vunpack.c.l.b16 %v2864
        %v2933 = vunpack.c.l.b16 %v2865
        %v2934 = vunpack.c.l.b16 %v2866
        %v2935 = vunpack.c.l.b16 %v2867
        %v2936 = vunpack.c.l.b16 %v2868
        %v2937 = vunpack.c.l.b16 %v2869
        %v2938 = vunpack.c.l.b16 %v2870
        %v2939 = vunpack.c.l.b16 %v2871
        %v2940 = vunpack.c.l.b16 %v2872
        %v2941 = vunpack.c.l.b16 %v2873
        %v2942 = vunpack.c.l.b16 %v2874
        %v2943 = vunpack.c.l.b16 %v2875
        %v2944 = vunpack.c.l.b16 %v2876
        %v2945 = vunpack.c.l.b16 %v2877
        %v2946 = vunpack.c.l.b16 %v2878
        %v2947 = vunpack.c.l.b16 %v2879
        %v2948 = vunpack.c.l.b16 %v2880
        %v2949 = vunpack.c.l.b16 %v2881
        %v2950 = vunpack.c.l.b16 %v2882
        %v2951 = vunpack.c.l.b16 %v2883
        %v2952 = vunpack.c.l.b16 %v2884
        %v2953 = vunpack.c.l.b16 %v2885
        %v2954 = vunpack.c.l.b16 %v2886
        %v2955 = vunpack.c.l.b16 %v2887
        %v2956 = vunpack.c.l.b16 %v2888
        %v2957 = vunpack.c.l.b16 %v2889
        %v2958 = vunpack.c.l.b16 %v2890
        %v2959 = vunpack.c.l.b16 %v2891
        %v2960 = vunpack.c.l.b16 %v2892
        %v2961 = vunpack.c.l.b16 %v2893
        %v2962 = vpack.c.b16 %v2931, %v2930
        %v2963 = vpack.c.b16 %v2933, %v2932
        %v2964 = vpack.c.b16 %v2935, %v2934
        %v2965 = vpack.c.b16 %v2937, %v2936
        %v2966 = vpack.c.b16 %v2939, %v2938
        %v2967 = vpack.c.b16 %v2941, %v2940
        %v2968 = vpack.c.b16 %v2943, %v2942
        %v2969 = vpack.c.b16 %v2945, %v2944
        %v2970 = vpack.c.b16 %v2947, %v2946
        %v2971 = vpack.c.b16 %v2949, %v2948
        %v2972 = vpack.c.b16 %v2951, %v2950
        %v2973 = vpack.c.b16 %v2953, %v2952
        %v2974 = vpack.c.b16 %v2955, %v2954
        %v2975 = vpack.c.b16 %v2957, %v2956
        %v2976 = vpack.c.b16 %v2959, %v2958
        %v2977 = vpack.c.b16 %v2961, %v2960
        %2994 = vmatpush.bf16.msra.mxu0 %v2969
        %2995 = vmatpush.bf16.msra.mxu0 %v2968
        %2996 = vmatpush.bf16.msra.mxu0 %v2967
        %2997 = vmatpush.bf16.msra.mxu0 %v2966
        %2998 = vmatpush.bf16.msra.mxu0 %v2965
        %2999 = vmatpush.bf16.msra.mxu0 %v2964
        %3000 = vmatpush.bf16.msra.mxu0 %v2963
        %3001 = vmatpush.bf16.msra.mxu0 %v2962
        %3002 = vmatmul.bf16.gmra.mxu0 %v2846
        %v3003 = vpop.f32.mrf.mxu0
        %v3004 = vadd.f32 %v2896, %v3003
        %v3005 = vpop.f32.mrf.mxu0
        %v3006 = vadd.f32 %v2896, %v3005
        %3007 = vmatmul.bf16.gmra.mxu0 %v2848
        %v3008 = vpop.f32.mrf.mxu0
        %v3009 = vadd.f32 %v2896, %v3008
        %v3010 = vpop.f32.mrf.mxu0
        %v3011 = vadd.f32 %v2896, %v3010
        %3012 = vmatmul.bf16.gmra.mxu0 %v2850
        %v3013 = vpop.f32.mrf.mxu0
        %v3014 = vadd.f32 %v2896, %v3013
        %v3015 = vpop.f32.mrf.mxu0
        %v3016 = vadd.f32 %v2896, %v3015
        %3017 = vmatmul.bf16.gmra.mxu0 %v2852
        %v3018 = vpop.f32.mrf.mxu0
        %v3019 = vadd.f32 %v2896, %v3018
        %v3020 = vpop.f32.mrf.mxu0
        %v3021 = vadd.f32 %v2896, %v3020
        %3022 = vmatmul.bf16.gmra.mxu0 %v2854
        %v3023 = vpop.f32.mrf.mxu0
        %v3024 = vadd.f32 %v2896, %v3023
        %v3025 = vpop.f32.mrf.mxu0
        %v3026 = vadd.f32 %v2896, %v3025
        %3027 = vmatmul.bf16.gmra.mxu0 %v2856
        %v3028 = vpop.f32.mrf.mxu0
        %v3029 = vadd.f32 %v2896, %v3028
        %v3030 = vpop.f32.mrf.mxu0
        %v3031 = vadd.f32 %v2896, %v3030
        %3032 = vmatmul.bf16.gmra.mxu0 %v2858
        %v3033 = vpop.f32.mrf.mxu0
        %v3034 = vadd.f32 %v2896, %v3033
        %v3035 = vpop.f32.mrf.mxu0
        %v3036 = vadd.f32 %v2896, %v3035
        %3037 = vmatmul.bf16.gmra.mxu0 %v2860
        %v3038 = vpop.f32.mrf.mxu0
        %v3039 = vadd.f32 %v2896, %v3038
        %v3040 = vpop.f32.mrf.mxu0
        %v3041 = vadd.f32 %v2896, %v3040
        %3042 = vdwg.mxu0
        %3043 = vmatpush.bf16.msra.mxu0 %v2977
        %3044 = vmatpush.bf16.msra.mxu0 %v2976
        %3045 = vmatpush.bf16.msra.mxu0 %v2975
        %3046 = vmatpush.bf16.msra.mxu0 %v2974
        %3047 = vmatpush.bf16.msra.mxu0 %v2973
        %3048 = vmatpush.bf16.msra.mxu0 %v2972
        %3049 = vmatpush.bf16.msra.mxu0 %v2971
        %3050 = vmatpush.bf16.msra.mxu0 %v2970
        %3051 = vmatmul.bf16.gmra.mxu0 %v2847
        %v3052 = vpop.f32.mrf.mxu0
        %v3053 = vadd.f32 %v3004, %v3052
        %v3054 = vpop.f32.mrf.mxu0
        %v3055 = vadd.f32 %v3006, %v3054
        %3056 = vmatmul.bf16.gmra.mxu0 %v2849
        %v3057 = vpop.f32.mrf.mxu0
        %v3058 = vadd.f32 %v3009, %v3057
        %v3059 = vpop.f32.mrf.mxu0
        %v3060 = vadd.f32 %v3011, %v3059
        %3061 = vmatmul.bf16.gmra.mxu0 %v2851
        %v3062 = vpop.f32.mrf.mxu0
        %v3063 = vadd.f32 %v3014, %v3062
        %v3064 = vpop.f32.mrf.mxu0
        %v3065 = vadd.f32 %v3016, %v3064
        %3066 = vmatmul.bf16.gmra.mxu0 %v2853
        %v3067 = vpop.f32.mrf.mxu0
        %v3068 = vadd.f32 %v3019, %v3067
        %v3069 = vpop.f32.mrf.mxu0
        %v3070 = vadd.f32 %v3021, %v3069
        %3071 = vmatmul.bf16.gmra.mxu0 %v2855
        %v3072 = vpop.f32.mrf.mxu0
        %v3073 = vadd.f32 %v3024, %v3072
        %v3074 = vpop.f32.mrf.mxu0
        %v3075 = vadd.f32 %v3026, %v3074
        %3076 = vmatmul.bf16.gmra.mxu0 %v2857
        %v3077 = vpop.f32.mrf.mxu0
        %v3078 = vadd.f32 %v3029, %v3077
        %v3079 = vpop.f32.mrf.mxu0
        %v3080 = vadd.f32 %v3031, %v3079
        %3081 = vmatmul.bf16.gmra.mxu0 %v2859
        %v3082 = vpop.f32.mrf.mxu0
        %v3083 = vadd.f32 %v3034, %v3082
        %v3084 = vpop.f32.mrf.mxu0
        %v3085 = vadd.f32 %v3036, %v3084
        %3086 = vmatmul.bf16.gmra.mxu0 %v2861
        %v3087 = vpop.f32.mrf.mxu0
        %v3088 = vadd.f32 %v3039, %v3087
        %v3089 = vpop.f32.mrf.mxu0
        %v3090 = vadd.f32 %v3041, %v3089
        %3091 = vdwg.mxu0
        %3092 = vst [vmem:[%s363] sm:$0xff] %v3053
        %3093 = vst [vmem:[%s363 + $0x8] sm:$0xff] %v3055
        %3094 = vst [vmem:[%s363 + $0x10] sm:$0xff] %v3058
        %3095 = vst [vmem:[%s363 + $0x18] sm:$0xff] %v3060
        %3096 = vst [vmem:[%s363 + $0x20] sm:$0xff] %v3063
        %3097 = vst [vmem:[%s363 + $0x28] sm:$0xff] %v3065
        %3098 = vst [vmem:[%s363 + $0x30] sm:$0xff] %v3068
        %3099 = vst [vmem:[%s363 + $0x38] sm:$0xff] %v3070
        %3100 = vst [vmem:[%s363 + $0x40] sm:$0xff] %v3073
        %3101 = vst [vmem:[%s363 + $0x48] sm:$0xff] %v3075
        %3102 = vst [vmem:[%s363 + $0x50] sm:$0xff] %v3078
        %3103 = vst [vmem:[%s363 + $0x58] sm:$0xff] %v3080
        %3104 = vst [vmem:[%s363 + $0x60] sm:$0xff] %v3083
        %3105 = vst [vmem:[%s363 + $0x68] sm:$0xff] %v3085
        %3106 = vst [vmem:[%s363 + $0x70] sm:$0xff] %v3088
        %3107 = vst [vmem:[%s363 + $0x78] sm:$0xff] %v3090
        %s3108 = sand.u32 %s186, 1
        %s3109 = scalar_lea.sflag [#allocation4], %s3108
        %s3110 = sand.u32 %s186, 1
        %s3111 = smul.addr %s3110, 128
        %s3112 = scalar_lea.vmem [#allocation11], %s3111
        // Predicated region
        $region69: #{tpu_custom_call.1} parent=47 // pred_check
          %p3113 = pneg %p196
        $region70: #{tpu_custom_call.1} parent=47 // pred_check_branch
          %3115 = sbr.rel (%p3113) target = $region72
        $region71: #{tpu_custom_call.1} parent=47 // pred_region
          %s3116 = smul.u32 16, %s26
          %3118 = vsyncadd %s3109, 0
          %s3119 = smul.addr %s3116, 8
          %s3120 = scalar_lea.hbm %s7, %s3119
          %s3121 = sshll.u32 %s3112, 4
          %s3122 = int_to_ptr.vmem [resolvable:$true] %s3121
          %s3123 = sshll.u32 %s3120, 4
          %s3124 = int_to_ptr.hbm [resolvable:$true] %s3123
          %3129 = dma.vmem_to_hbm [thread:$0]  %s3122, 2048, %s3124, %s3109, 128, 128, 8
        $region72: #{tpu_custom_call.1} parent=47 // pred_fallthru
          _
      $region48: #{tpu_custom_call.1} parent=5 // pred_fallthru
        _
      %p3130 = scmp.le.s32.totalorder 2, %s21
      // Predicated region
      $region73: #{tpu_custom_call.1} parent=5 // pred_check
        %p3131 = pneg %p3130
      $region74: #{tpu_custom_call.1} parent=5 // pred_check_branch
        %3133 = sbr.rel (%p3131) target = $region76
      $region75: #{tpu_custom_call.1} parent=5 // pred_region
        %s3134 = ssub.s32 %s21, 2
        // Predicated region
        $region77: #{tpu_custom_call.1} parent=75 // pred_check
          %p3135 = pneg %p202
        $region78: #{tpu_custom_call.1} parent=75 // pred_check_branch
          %3137 = sbr.rel (%p3135) target = $region80
        $region79: #{tpu_custom_call.1} parent=75 // pred_region
          %s3138 = sand.u32 %s187, 1
          %s3139 = scalar_lea.sflag [#allocation4], %s3138
          %s3140 = sand.u32 %s187, 1
          %s3141 = smul.addr %s3140, 128
          %s3142 = scalar_lea.vmem [#allocation11], %s3141
          %3144 = dma.done %s3139, 2048
        $region80: #{tpu_custom_call.1} parent=75 // pred_fallthru
          _
      $region76: #{tpu_custom_call.1} parent=5 // pred_fallthru
        _
    $region6: #{tpu_custom_call.1} parent=1 // loop_footer
      %s25 = sadd.s32 1, %s21
    $region7: #{tpu_custom_call.1} parent=1 // loop_footer_branch
      %20 = sbr.rel target = $region3
    $region8: #{tpu_custom_call.1} parent=1 // loop_exit
      _
    %3145 = vsyncpa [#allocation3], 1
    %s3146 = scalar_lea.sflag [#allocation3], 1
    %3147 = vsyncpa %s3146, 1
    %3148 = vsyncpa [#allocation6], 1
    %3149 = vsyncpa [#allocation9], 1
    %3150 = vsyncpa [#allocation4], 1
    %s3151 = scalar_lea.sflag [#allocation4], 1
    %3152 = vsyncpa %s3151, 1

</llo_original>
